<compile_context>
chip_gen: v7x
topology: tpu7x:2x2x1
jax: 0.10.0
libtpu: 0.0.40
codegen_flags: <defaults>
</compile_context>

<pallas_src>
import functools
import math

import jax
import jax.numpy as jnp
from jax.experimental import pallas as pl
from jax.experimental.pallas import tpu as pltpu

_SQRT_2_OVER_PI = 0.7978845608028654
_GN_EPS = 1e-5


def _gelu(x):
    # TODO(synk): PyTorch nn.GELU() defaults to the exact erf form; the tanh
    # approximation is used because erf lowering is not guaranteed in Mosaic
    # (max deviation ~3e-4).
    return 0.5 * x * (1.0 + jnp.tanh(_SQRT_2_OVER_PI * (x + 0.044715 * x * x * x)))


# ---------------------------------------------------------------------------
# Single fused kernel: whole Up.forward for one sample
# ---------------------------------------------------------------------------
def _up_fused_kernel(x2_ref, up_ref, wmats_ref, affine_ref, wsc_ref, bsc_ref,
                     o_ref, *, width, num_blocks, residual):
    """All refs use layout (channels, H*W) with H*W on lanes.

    x2_ref:     (1, C, P)            skip connection, C = out_channels
    up_ref:     (1, C, P)            2x nearest-upsampled x1, channels padded
                                     in_channels -> C with zeros
    wmats_ref:  (2*num_blocks+1, C, 9*C)  im2col weight matrices:
                [0] block0.conv1 (x2 part), [1] block0.conv1 (up part, zero
                padded), [2] block0.conv2, then conv1/conv2 of later blocks.
    affine_ref: (6*num_blocks, C, 1)  per conv layer: bias, gamma, beta
    wsc_ref:    (C, C)               1x1 shortcut weights (zero-padded cols)
    bsc_ref:    (C, 1)               shortcut bias
    o_ref:      (1, C, P)
    """
    f32 = jnp.float32
    x2 = x2_ref[0].astype(f32)          # (C, P)
    up = up_ref[0].astype(f32)          # (C, P)
    C, P = x2.shape

    # lane index -> column index, for the circular column-wrap fix-up
    col = jax.lax.broadcasted_iota(jnp.int32, (C, P), 1) % width
    first_col = col == 0
    last_col = col == width - 1

    def lane_roll(v, shift):
        shift = shift % P               # keep rotate amounts non-negative
        return v if shift == 0 else pltpu.roll(v, shift, axis=1)

    def col_shift(v, dx):
        # v(r, c) -> v(r, (c + dx) mod W); rows (flattened r) untouched.
        if dx == 0:
            return v
        if dx == 1:
            return jnp.where(last_col, lane_roll(v, width - 1), lane_roll(v, -1))
        return jnp.where(first_col, lane_roll(v, -(width - 1)), lane_roll(v, 1))

    def im2col(v):
        # (C, P) -> (9*C, P). Row block k = tap (dy, dx), k = (dy+1)*3+(dx+1),
        # holding v((r+dy) mod H, (c+dx) mod W)  == circular 'same' padding.
        cols = [col_shift(v, dx) for dx in (-1, 0, 1)]
        taps = []
        for dy in (-1, 0, 1):
            for vc in cols:
                taps.append(vc if dy == 0 else lane_roll(vc, -dy * width))
        return jnp.concatenate(taps, axis=0)

    def mm(w, v):
        return jnp.dot(w.astype(f32), v, preferred_element_type=f32)

    def conv_epilogue(acc, layer):
        # bias + GroupNorm(1 group, biased variance, single pass) + GELU
        bias = affine_ref[3 * layer + 0].astype(f32)     # (C, 1)
        gamma = affine_ref[3 * layer + 1].astype(f32)
        beta = affine_ref[3 * layer + 2].astype(f32)
        acc = acc + bias
        n = acc.shape[0] * acc.shape[1]
        mean = jnp.sum(acc) / n
        var = jnp.sum(acc * acc) / n - mean * mean
        y = (acc - mean) * jax.lax.rsqrt(var + _GN_EPS) * gamma + beta
        return _gelu(y)

    # ---- block 0 (conv1 input is cat([x2, up]) -> two im2col matmuls) ----
    acc = mm(wmats_ref[0], im2col(x2)) + mm(wmats_ref[1], im2col(up))
    h = conv_epilogue(acc, 0)
    h = conv_epilogue(mm(wmats_ref[2], im2col(h)), 1)
    if residual:
        h = h + mm(wsc_ref[...], up) + bsc_ref[...].astype(f32)   # shortcut
    x = h

    # ---- remaining blocks ----
    for blk in range(1, num_blocks):
        w0 = 2 * blk + 1
        h = conv_epilogue(mm(wmats_ref[w0], im2col(h)), 2 * blk)
        h = conv_epilogue(mm(wmats_ref[w0 + 1], im2col(h)), 2 * blk + 1)
        if residual:
            h = h + x
            x = h

    o_ref[...] = h[None].astype(o_ref.dtype)


# ---------------------------------------------------------------------------
# Parameter packing (PyTorch layout -> kernel layout)
# ---------------------------------------------------------------------------
def _pack_params(params, in_channels, out_channels, num_blocks, residual):
    C = out_channels
    assert in_channels <= C, "channel zero-padding assumes in_channels <= out_channels"

    def to_mat(w):   # (C, cin, 3, 3) -> (C, 9*cin), columns tap-major / ch-minor
        co, ci = w.shape[0], w.shape[1]
        return jnp.transpose(w, (0, 2, 3, 1)).reshape(co, 9 * ci)

    blocks = params["blocks"]
    b0 = blocks[0]
    w1 = b0["w1"]                                  # (C, C + in_channels, 3, 3)
    w1_up = jnp.pad(w1[:, C:], ((0, 0), (0, C - in_channels), (0, 0), (0, 0)))
    mats = [to_mat(w1[:, :C]), to_mat(w1_up), to_mat(b0["w2"])]
    affine = [b0["b1"], b0["g1"], b0["be1"], b0["b2"], b0["g2"], b0["be2"]]
    for blk in blocks[1:]:
        mats += [to_mat(blk["w1"]), to_mat(blk["w2"])]
        affine += [blk["b1"], blk["g1"], blk["be1"],
                   blk["b2"], blk["g2"], blk["be2"]]
    wmats = jnp.stack(mats).astype(jnp.float32)                  # (2B+1, C, 9C)
    affine = jnp.stack(affine).astype(jnp.float32)[..., None]    # (6B, C, 1)
    if residual:
        wsc = jnp.pad(params["w_sc"][:, :, 0, 0],
                      ((0, 0), (0, C - in_channels))).astype(jnp.float32)
        bsc = params["b_sc"][:, None].astype(jnp.float32)
    else:
        wsc = jnp.zeros((C, C), jnp.float32)
        bsc = jnp.zeros((C, 1), jnp.float32)
    return wmats, affine, wsc, bsc


# ---------------------------------------------------------------------------
# Wrapper: Up.forward (NCHW in / NCHW out, like the PyTorch module)
# ---------------------------------------------------------------------------
def up_forward(params, x1_nchw, x2_nchw, *, num_blocks=2, residual=True):
    # TODO(synk): up=False branch not implemented (module is used with up=True).
    N, cin, h1, w1 = x1_nchw.shape
    _, cout, H, Wd = x2_nchw.shape
    assert (H, Wd) == (2 * h1, 2 * w1)
    P = H * Wd

    # circular_interpolate('nearest'): circular pad(2) + 2x nearest + crop(4)
    # cancels exactly to a plain 2x nearest-neighbor upsample.
    up = jnp.repeat(jnp.repeat(x1_nchw, 2, axis=2), 2, axis=3)

    # Kernel layout: channels on sublanes, flattened H*W on lanes.
    # NCHW is already channel-major, so these reshapes are free (no transpose).
    up_flat = jnp.pad(up.reshape(N, cin, P), ((0, 0), (0, cout - cin), (0, 0)))
    x2_flat = x2_nchw.reshape(N, cout, P)

    wmats, affine, wsc, bsc = _pack_params(params, cin, cout, num_blocks, residual)

    kernel = functools.partial(_up_fused_kernel, width=Wd,
                               num_blocks=num_blocks, residual=residual)
    out = pl.pallas_call(
        kernel,
        out_shape=jax.ShapeDtypeStruct((N, cout, P), x2_nchw.dtype),
        grid=(N,),
        in_specs=[
            pl.BlockSpec((1, cout, P), lambda n: (n, 0, 0)),       # x2
            pl.BlockSpec((1, cout, P), lambda n: (n, 0, 0)),       # up (padded)
            pl.BlockSpec(wmats.shape, lambda n: (0, 0, 0)),        # conv weights
            pl.BlockSpec(affine.shape, lambda n: (0, 0, 0)),       # bias/gamma/beta
            pl.BlockSpec(wsc.shape, lambda n: (0, 0)),             # shortcut W
            pl.BlockSpec(bsc.shape, lambda n: (0, 0)),             # shortcut b
        ],
        out_specs=pl.BlockSpec((1, cout, P), lambda n: (n, 0, 0)),
        compiler_params=pltpu.CompilerParams(
            dimension_semantics=("parallel",)),
    )(x2_flat, up_flat, wmats, affine, wsc, bsc)
    return out.reshape(N, cout, H, Wd)


# ---------------------------------------------------------------------------
# Pure-JAX reference (for correctness check) + parameter init
# ---------------------------------------------------------------------------
def _ref_conv(x, w, b):
    if w.shape[-1] == 3:
        x = jnp.pad(x, ((0, 0), (0, 0), (1, 1), (1, 1)), mode="wrap")
    y = jax.lax.conv_general_dilated(
        x, w, window_strides=(1, 1), padding="VALID",
        dimension_numbers=("NCHW", "OIHW", "NCHW"),
        precision=jax.lax.Precision.HIGHEST)
    return y + b[None, :, None, None]


def _ref_gn(x, gamma, beta):
    mean = jnp.mean(x, axis=(1, 2, 3), keepdims=True)
    var = jnp.mean((x - mean) ** 2, axis=(1, 2, 3), keepdims=True)
    xn = (x - mean) * jax.lax.rsqrt(var + _GN_EPS)
    return xn * gamma[None, :, None, None] + beta[None, :, None, None]


def ref_up_forward(params, x1, x2, *, num_blocks=2, residual=True):
    h = jnp.repeat(jnp.repeat(x1, 2, axis=2), 2, axis=3)
    x = h
    h = jnp.concatenate([x2, h], axis=1)
    for blk in range(num_blocks):
        p = params["blocks"][blk]
        h = _gelu(_ref_gn(_ref_conv(h, p["w1"], p["b1"]), p["g1"], p["be1"]))
        h = _gelu(_ref_gn(_ref_conv(h, p["w2"], p["b2"]), p["g2"], p["be2"]))
        if residual:
            if blk == 0:
                h = h + _ref_conv(x, params["w_sc"], params["b_sc"])
            else:
                h = h + x
            x = h
    return h


def init_up_params(key, in_channels, out_channels, num_blocks, residual):
    def conv_p(k, cin, cout, ksz):
        kw, kb = jax.random.split(k)
        lim = 1.0 / math.sqrt(ksz * ksz * cin)
        w = jax.random.uniform(kw, (cout, cin, ksz, ksz), jnp.float32, -lim, lim)
        b = jax.random.uniform(kb, (cout,), jnp.float32, -lim, lim)
        return w, b

    keys = jax.random.split(key, num_blocks + 1)
    in0 = in_channels + out_channels
    blocks = []
    for blk in range(num_blocks):
        k1, k2, k3, k4, k5, k6 = jax.random.split(keys[blk], 6)
        cin1 = in0 if blk == 0 else out_channels
        w1, b1 = conv_p(k1, cin1, out_channels, 3)
        w2, b2 = conv_p(k2, out_channels, out_channels, 3)
        blocks.append(dict(
            w1=w1, b1=b1,
            g1=1.0 + 0.1 * jax.random.normal(k3, (out_channels,), jnp.float32),
            be1=0.1 * jax.random.normal(k4, (out_channels,), jnp.float32),
            w2=w2, b2=b2,
            g2=1.0 + 0.1 * jax.random.normal(k5, (out_channels,), jnp.float32),
            be2=0.1 * jax.random.normal(k6, (out_channels,), jnp.float32),
        ))
    params = {"blocks": blocks}
    if residual:
        w_sc, b_sc = conv_p(keys[-1], in_channels, out_channels, 1)
        params["w_sc"], params["b_sc"] = w_sc, b_sc
    return params


if __name__ == "__main__":
    in_channels, out_channels = 4, 8
    num_blocks, residual = 2, True
    N, H1, W1 = 2, 8, 8                      # x1 spatial; upsampled to 16x16

    key = jax.random.PRNGKey(0)
    kp, k1, k2 = jax.random.split(key, 3)
    params = init_up_params(kp, in_channels, out_channels, num_blocks, residual)
    x1 = jax.random.normal(k1, (N, in_channels, H1, W1), jnp.float32)
    x2 = jax.random.normal(k2, (N, out_channels, 2 * H1, 2 * W1), jnp.float32)

    fwd = jax.jit(functools.partial(up_forward, num_blocks=num_blocks,
                                    residual=residual))
    out = jax.block_until_ready(fwd(params, x1, x2))
    assert out.shape == (N, out_channels, 2 * H1, 2 * W1), out.shape
    assert bool(jnp.all(jnp.isfinite(out)))

    ref = ref_up_forward(params, x1, x2, num_blocks=num_blocks, residual=residual)
    err = float(jnp.max(jnp.abs(out - ref)))
    assert err < 5e-2, f"max |err| vs reference = {err}"
    print("KERNEL_OK")
</pallas_src>

<mosaic_0001>
module attributes {stable_mosaic.version = 11 : i64} {
  func.func @_up_fused_kernel(%arg0: i32, %arg1: memref<1x8x256xf32, #tpu.memory_space<vmem>>, %arg2: memref<1x8x256xf32, #tpu.memory_space<vmem>>, %arg3: memref<5x8x72xf32, #tpu.memory_space<vmem>>, %arg4: memref<12x8x1xf32, #tpu.memory_space<vmem>>, %arg5: memref<8x8xf32, #tpu.memory_space<vmem>>, %arg6: memref<8x1xf32, #tpu.memory_space<vmem>>, %arg7: memref<1x8x256xf32, #tpu.memory_space<vmem>>) attributes {dimension_semantics = [#tpu.dimension_semantics<parallel>], iteration_bounds = array<i64: 2>, scalar_prefetch = 0 : i64, scratch_operands = 0 : i64, tpu.core_type = #tpu.core_type<tc>, window_params = [{transform_indices = @transform_0, window_bounds = array<i64: 1, 8, 256>}, {transform_indices = @transform_1, window_bounds = array<i64: 1, 8, 256>}, {pipeline_mode = #tpu.pipeline_mode<synchronous>, transform_indices = @transform_2, window_bounds = array<i64: 5, 8, 72>}, {pipeline_mode = #tpu.pipeline_mode<synchronous>, transform_indices = @transform_3, window_bounds = array<i64: 12, 8, 1>}, {pipeline_mode = #tpu.pipeline_mode<synchronous>, transform_indices = @transform_4, window_bounds = array<i64: 8, 8>}, {pipeline_mode = #tpu.pipeline_mode<synchronous>, transform_indices = @transform_5, window_bounds = array<i64: 8, 1>}, {transform_indices = @transform_6, window_bounds = array<i64: 1, 8, 256>}]} {
    %c0 = arith.constant 0 : index
    %c0_0 = arith.constant 0 : index
    %c0_1 = arith.constant 0 : index
    %0 = vector.load %arg1[%c0, %c0_0, %c0_1] : memref<1x8x256xf32, #tpu.memory_space<vmem>>, vector<1x8x256xf32>
    %1 = vector.shape_cast %0 : vector<1x8x256xf32> to vector<8x256xf32>
    %c0_2 = arith.constant 0 : index
    %c0_3 = arith.constant 0 : index
    %c0_4 = arith.constant 0 : index
    %2 = vector.load %arg2[%c0_2, %c0_3, %c0_4] : memref<1x8x256xf32, #tpu.memory_space<vmem>>, vector<1x8x256xf32>
    %3 = vector.shape_cast %2 : vector<1x8x256xf32> to vector<8x256xf32>
    %4 = tpu.iota {dimensions = array<i32: 1>} : vector<8x256xi32>
    %c16_i32 = arith.constant 16 : i32
    %c0_i32 = arith.constant 0 : i32
    %5 = arith.cmpi eq, %c16_i32, %c0_i32 : i32
    %c1_i32 = arith.constant 1 : i32
    %6 = arith.select %5, %c1_i32, %c16_i32 : i32
    %7 = vector.broadcast %6 : i32 to vector<8x256xi32>
    %8 = arith.remsi %4, %7 : vector<8x256xi32>
    %c0_i32_5 = arith.constant 0 : i32
    %9 = vector.broadcast %c0_i32_5 : i32 to vector<8x256xi32>
    %10 = arith.cmpi ne, %8, %9 : vector<8x256xi32>
    %c0_i32_6 = arith.constant 0 : i32
    %11 = vector.broadcast %c0_i32_6 : i32 to vector<8x256xi32>
    %12 = arith.cmpi slt, %8, %11 : vector<8x256xi32>
    %c0_i32_7 = arith.constant 0 : i32
    %13 = arith.cmpi slt, %6, %c0_i32_7 : i32
    %14 = vector.broadcast %13 : i1 to vector<8x256xi1>
    %15 = vector.broadcast %14 : vector<8x256xi1> to vector<8x256xi1>
    %16 = arith.xori %12, %15 : vector<8x256xi1>
    %17 = arith.andi %16, %10 : vector<8x256xi1>
    %18 = vector.broadcast %6 : i32 to vector<8x256xi32>
    %19 = arith.addi %8, %18 : vector<8x256xi32>
    %20 = arith.select %17, %19, %8 : vector<8x256xi1>, vector<8x256xi32>
    %c0_i32_8 = arith.constant 0 : i32
    %21 = vector.broadcast %c0_i32_8 : i32 to vector<8x256xi32>
    %22 = arith.cmpi eq, %20, %21 : vector<8x256xi32>
    %c15_i32 = arith.constant 15 : i32
    %23 = vector.broadcast %c15_i32 : i32 to vector<8x256xi32>
    %24 = arith.cmpi eq, %20, %23 : vector<8x256xi32>
    %c0_9 = arith.constant 0 : index
    %c0_10 = arith.constant 0 : index
    %c0_11 = arith.constant 0 : index
    %25 = vector.load %arg3[%c0_9, %c0_10, %c0_11] : memref<5x8x72xf32, #tpu.memory_space<vmem>>, vector<1x8x72xf32>
    %26 = vector.shape_cast %25 : vector<1x8x72xf32> to vector<8x72xf32>
    %c241_i32 = arith.constant 241 : i32
    %27 = tpu.dynamic_rotate %1 by %c241_i32 dim 1 : vector<8x256xf32>, i32 -> vector<8x256xf32>
    %c1_i32_12 = arith.constant 1 : i32
    %28 = tpu.dynamic_rotate %1 by %c1_i32_12 dim 1 : vector<8x256xf32>, i32 -> vector<8x256xf32>
    %29 = arith.select %22, %27, %28 : vector<8x256xi1>, vector<8x256xf32>
    %c15_i32_13 = arith.constant 15 : i32
    %30 = tpu.dynamic_rotate %1 by %c15_i32_13 dim 1 : vector<8x256xf32>, i32 -> vector<8x256xf32>
    %c255_i32 = arith.constant 255 : i32
    %31 = tpu.dynamic_rotate %1 by %c255_i32 dim 1 : vector<8x256xf32>, i32 -> vector<8x256xf32>
    %32 = arith.select %24, %30, %31 : vector<8x256xi1>, vector<8x256xf32>
    %c16_i32_14 = arith.constant 16 : i32
    %33 = tpu.dynamic_rotate %29 by %c16_i32_14 dim 1 : vector<8x256xf32>, i32 -> vector<8x256xf32>
    %c16_i32_15 = arith.constant 16 : i32
    %34 = tpu.dynamic_rotate %1 by %c16_i32_15 dim 1 : vector<8x256xf32>, i32 -> vector<8x256xf32>
    %c16_i32_16 = arith.constant 16 : i32
    %35 = tpu.dynamic_rotate %32 by %c16_i32_16 dim 1 : vector<8x256xf32>, i32 -> vector<8x256xf32>
    %c240_i32 = arith.constant 240 : i32
    %36 = tpu.dynamic_rotate %29 by %c240_i32 dim 1 : vector<8x256xf32>, i32 -> vector<8x256xf32>
    %c240_i32_17 = arith.constant 240 : i32
    %37 = tpu.dynamic_rotate %1 by %c240_i32_17 dim 1 : vector<8x256xf32>, i32 -> vector<8x256xf32>
    %c240_i32_18 = arith.constant 240 : i32
    %38 = tpu.dynamic_rotate %32 by %c240_i32_18 dim 1 : vector<8x256xf32>, i32 -> vector<8x256xf32>
    %39 = tpu.concatenate %33, %34, %35, %29, %1, %32, %36, %37, %38 in 0 : vector<8x256xf32>, vector<8x256xf32>, vector<8x256xf32>, vector<8x256xf32>, vector<8x256xf32>, vector<8x256xf32>, vector<8x256xf32>, vector<8x256xf32>, vector<8x256xf32> -> vector<72x256xf32>
    %cst = arith.constant dense<0.000000e+00> : vector<8x256xf32>
    %40 = tpu.matmul %26, %39, %cst {dimension_numbers = #tpu.dot_dimension_numbers<[1], [0], [0], [1], [0, 0, 1, 1], [], []>} : vector<8x72xf32>, vector<72x256xf32>, vector<8x256xf32> -> vector<8x256xf32>
    %c1 = arith.constant 1 : index
    %c0_19 = arith.constant 0 : index
    %c0_20 = arith.constant 0 : index
    %41 = vector.load %arg3[%c1, %c0_19, %c0_20] : memref<5x8x72xf32, #tpu.memory_space<vmem>>, vector<1x8x72xf32>
    %42 = vector.shape_cast %41 : vector<1x8x72xf32> to vector<8x72xf32>
    %c241_i32_21 = arith.constant 241 : i32
    %43 = tpu.dynamic_rotate %3 by %c241_i32_21 dim 1 : vector<8x256xf32>, i32 -> vector<8x256xf32>
    %c1_i32_22 = arith.constant 1 : i32
    %44 = tpu.dynamic_rotate %3 by %c1_i32_22 dim 1 : vector<8x256xf32>, i32 -> vector<8x256xf32>
    %45 = arith.select %22, %43, %44 : vector<8x256xi1>, vector<8x256xf32>
    %c15_i32_23 = arith.constant 15 : i32
    %46 = tpu.dynamic_rotate %3 by %c15_i32_23 dim 1 : vector<8x256xf32>, i32 -> vector<8x256xf32>
    %c255_i32_24 = arith.constant 255 : i32
    %47 = tpu.dynamic_rotate %3 by %c255_i32_24 dim 1 : vector<8x256xf32>, i32 -> vector<8x256xf32>
    %48 = arith.select %24, %46, %47 : vector<8x256xi1>, vector<8x256xf32>
    %c16_i32_25 = arith.constant 16 : i32
    %49 = tpu.dynamic_rotate %45 by %c16_i32_25 dim 1 : vector<8x256xf32>, i32 -> vector<8x256xf32>
    %c16_i32_26 = arith.constant 16 : i32
    %50 = tpu.dynamic_rotate %3 by %c16_i32_26 dim 1 : vector<8x256xf32>, i32 -> vector<8x256xf32>
    %c16_i32_27 = arith.constant 16 : i32
    %51 = tpu.dynamic_rotate %48 by %c16_i32_27 dim 1 : vector<8x256xf32>, i32 -> vector<8x256xf32>
    %c240_i32_28 = arith.constant 240 : i32
    %52 = tpu.dynamic_rotate %45 by %c240_i32_28 dim 1 : vector<8x256xf32>, i32 -> vector<8x256xf32>
    %c240_i32_29 = arith.constant 240 : i32
    %53 = tpu.dynamic_rotate %3 by %c240_i32_29 dim 1 : vector<8x256xf32>, i32 -> vector<8x256xf32>
    %c240_i32_30 = arith.constant 240 : i32
    %54 = tpu.dynamic_rotate %48 by %c240_i32_30 dim 1 : vector<8x256xf32>, i32 -> vector<8x256xf32>
    %55 = tpu.concatenate %49, %50, %51, %45, %3, %48, %52, %53, %54 in 0 : vector<8x256xf32>, vector<8x256xf32>, vector<8x256xf32>, vector<8x256xf32>, vector<8x256xf32>, vector<8x256xf32>, vector<8x256xf32>, vector<8x256xf32>, vector<8x256xf32> -> vector<72x256xf32>
    %cst_31 = arith.constant dense<0.000000e+00> : vector<8x256xf32>
    %56 = tpu.matmul %42, %55, %cst_31 {dimension_numbers = #tpu.dot_dimension_numbers<[1], [0], [0], [1], [0, 0, 1, 1], [], []>} : vector<8x72xf32>, vector<72x256xf32>, vector<8x256xf32> -> vector<8x256xf32>
    %57 = arith.addf %40, %56 : vector<8x256xf32>
    %c0_32 = arith.constant 0 : index
    %c0_33 = arith.constant 0 : index
    %c0_34 = arith.constant 0 : index
    %58 = vector.load %arg4[%c0_32, %c0_33, %c0_34] : memref<12x8x1xf32, #tpu.memory_space<vmem>>, vector<1x8x1xf32>
    %59 = vector.shape_cast %58 : vector<1x8x1xf32> to vector<8x1xf32>
    %c1_35 = arith.constant 1 : index
    %c0_36 = arith.constant 0 : index
    %c0_37 = arith.constant 0 : index
    %60 = vector.load %arg4[%c1_35, %c0_36, %c0_37] : memref<12x8x1xf32, #tpu.memory_space<vmem>>, vector<1x8x1xf32>
    %61 = vector.shape_cast %60 : vector<1x8x1xf32> to vector<8x1xf32>
    %c2 = arith.constant 2 : index
    %c0_38 = arith.constant 0 : index
    %c0_39 = arith.constant 0 : index
    %62 = vector.load %arg4[%c2, %c0_38, %c0_39] : memref<12x8x1xf32, #tpu.memory_space<vmem>>, vector<1x8x1xf32>
    %63 = vector.shape_cast %62 : vector<1x8x1xf32> to vector<8x1xf32>
    %64 = vector.broadcast %59 : vector<8x1xf32> to vector<8x256xf32>
    %65 = arith.addf %57, %64 : vector<8x256xf32>
    %66 = vector.shape_cast %65 : vector<8x256xf32> to vector<1x8x256xf32>
    %cst_40 = arith.constant dense<0.000000e+00> : vector<1xf32>
    %67 = vector.multi_reduction <add>, %66, %cst_40 [1, 2] : vector<1x8x256xf32> to vector<1xf32>
    %68 = vector.shape_cast %67 : vector<1xf32> to vector<1x1x1xf32>
    %69 = vector.extract %68[0, 0, 0] : f32 from vector<1x1x1xf32>
    %cst_41 = arith.constant 2.048000e+03 : f32
    %70 = arith.divf %69, %cst_41 : f32
    %71 = arith.mulf %65, %65 : vector<8x256xf32>
    %72 = vector.shape_cast %71 : vector<8x256xf32> to vector<1x8x256xf32>
    %cst_42 = arith.constant dense<0.000000e+00> : vector<1xf32>
    %73 = vector.multi_reduction <add>, %72, %cst_42 [1, 2] : vector<1x8x256xf32> to vector<1xf32>
    %74 = vector.shape_cast %73 : vector<1xf32> to vector<1x1x1xf32>
    %75 = vector.extract %74[0, 0, 0] : f32 from vector<1x1x1xf32>
    %cst_43 = arith.constant 2.048000e+03 : f32
    %76 = arith.divf %75, %cst_43 : f32
    %77 = arith.mulf %70, %70 : f32
    %78 = arith.subf %76, %77 : f32
    %79 = vector.broadcast %70 : f32 to vector<8x256xf32>
    %80 = arith.subf %65, %79 : vector<8x256xf32>
    %cst_44 = arith.constant 9.99999974E-6 : f32
    %81 = arith.addf %78, %cst_44 : f32
    %82 = math.rsqrt %81 : f32
    %83 = vector.broadcast %82 : f32 to vector<8x256xf32>
    %84 = arith.mulf %80, %83 : vector<8x256xf32>
    %85 = vector.broadcast %61 : vector<8x1xf32> to vector<8x256xf32>
    %86 = arith.mulf %84, %85 : vector<8x256xf32>
    %87 = vector.broadcast %63 : vector<8x1xf32> to vector<8x256xf32>
    %88 = arith.addf %86, %87 : vector<8x256xf32>
    %cst_45 = arith.constant 5.000000e-01 : f32
    %89 = vector.broadcast %cst_45 : f32 to vector<8x256xf32>
    %90 = arith.mulf %89, %88 : vector<8x256xf32>
    %cst_46 = arith.constant 4.471500e-02 : f32
    %91 = vector.broadcast %cst_46 : f32 to vector<8x256xf32>
    %92 = arith.mulf %91, %88 : vector<8x256xf32>
    %93 = arith.mulf %92, %88 : vector<8x256xf32>
    %94 = arith.mulf %93, %88 : vector<8x256xf32>
    %95 = arith.addf %88, %94 : vector<8x256xf32>
    %cst_47 = arith.constant 0.797884583 : f32
    %96 = vector.broadcast %cst_47 : f32 to vector<8x256xf32>
    %97 = arith.mulf %96, %95 : vector<8x256xf32>
    %98 = math.tanh %97 : vector<8x256xf32>
    %cst_48 = arith.constant 1.000000e+00 : f32
    %99 = vector.broadcast %cst_48 : f32 to vector<8x256xf32>
    %100 = arith.addf %99, %98 : vector<8x256xf32>
    %101 = arith.mulf %90, %100 : vector<8x256xf32>
    %c2_49 = arith.constant 2 : index
    %c0_50 = arith.constant 0 : index
    %c0_51 = arith.constant 0 : index
    %102 = vector.load %arg3[%c2_49, %c0_50, %c0_51] : memref<5x8x72xf32, #tpu.memory_space<vmem>>, vector<1x8x72xf32>
    %103 = vector.shape_cast %102 : vector<1x8x72xf32> to vector<8x72xf32>
    %c241_i32_52 = arith.constant 241 : i32
    %104 = tpu.dynamic_rotate %101 by %c241_i32_52 dim 1 : vector<8x256xf32>, i32 -> vector<8x256xf32>
    %c1_i32_53 = arith.constant 1 : i32
    %105 = tpu.dynamic_rotate %101 by %c1_i32_53 dim 1 : vector<8x256xf32>, i32 -> vector<8x256xf32>
    %106 = arith.select %22, %104, %105 : vector<8x256xi1>, vector<8x256xf32>
    %c15_i32_54 = arith.constant 15 : i32
    %107 = tpu.dynamic_rotate %101 by %c15_i32_54 dim 1 : vector<8x256xf32>, i32 -> vector<8x256xf32>
    %c255_i32_55 = arith.constant 255 : i32
    %108 = tpu.dynamic_rotate %101 by %c255_i32_55 dim 1 : vector<8x256xf32>, i32 -> vector<8x256xf32>
    %109 = arith.select %24, %107, %108 : vector<8x256xi1>, vector<8x256xf32>
    %c16_i32_56 = arith.constant 16 : i32
    %110 = tpu.dynamic_rotate %106 by %c16_i32_56 dim 1 : vector<8x256xf32>, i32 -> vector<8x256xf32>
    %c16_i32_57 = arith.constant 16 : i32
    %111 = tpu.dynamic_rotate %101 by %c16_i32_57 dim 1 : vector<8x256xf32>, i32 -> vector<8x256xf32>
    %c16_i32_58 = arith.constant 16 : i32
    %112 = tpu.dynamic_rotate %109 by %c16_i32_58 dim 1 : vector<8x256xf32>, i32 -> vector<8x256xf32>
    %c240_i32_59 = arith.constant 240 : i32
    %113 = tpu.dynamic_rotate %106 by %c240_i32_59 dim 1 : vector<8x256xf32>, i32 -> vector<8x256xf32>
    %c240_i32_60 = arith.constant 240 : i32
    %114 = tpu.dynamic_rotate %101 by %c240_i32_60 dim 1 : vector<8x256xf32>, i32 -> vector<8x256xf32>
    %c240_i32_61 = arith.constant 240 : i32
    %115 = tpu.dynamic_rotate %109 by %c240_i32_61 dim 1 : vector<8x256xf32>, i32 -> vector<8x256xf32>
    %116 = tpu.concatenate %110, %111, %112, %106, %101, %109, %113, %114, %115 in 0 : vector<8x256xf32>, vector<8x256xf32>, vector<8x256xf32>, vector<8x256xf32>, vector<8x256xf32>, vector<8x256xf32>, vector<8x256xf32>, vector<8x256xf32>, vector<8x256xf32> -> vector<72x256xf32>
    %cst_62 = arith.constant dense<0.000000e+00> : vector<8x256xf32>
    %117 = tpu.matmul %103, %116, %cst_62 {dimension_numbers = #tpu.dot_dimension_numbers<[1], [0], [0], [1], [0, 0, 1, 1], [], []>} : vector<8x72xf32>, vector<72x256xf32>, vector<8x256xf32> -> vector<8x256xf32>
    %c3 = arith.constant 3 : index
    %c0_63 = arith.constant 0 : index
    %c0_64 = arith.constant 0 : index
    %118 = vector.load %arg4[%c3, %c0_63, %c0_64] : memref<12x8x1xf32, #tpu.memory_space<vmem>>, vector<1x8x1xf32>
    %119 = vector.shape_cast %118 : vector<1x8x1xf32> to vector<8x1xf32>
    %c4 = arith.constant 4 : index
    %c0_65 = arith.constant 0 : index
    %c0_66 = arith.constant 0 : index
    %120 = vector.load %arg4[%c4, %c0_65, %c0_66] : memref<12x8x1xf32, #tpu.memory_space<vmem>>, vector<1x8x1xf32>
    %121 = vector.shape_cast %120 : vector<1x8x1xf32> to vector<8x1xf32>
    %c5 = arith.constant 5 : index
    %c0_67 = arith.constant 0 : index
    %c0_68 = arith.constant 0 : index
    %122 = vector.load %arg4[%c5, %c0_67, %c0_68] : memref<12x8x1xf32, #tpu.memory_space<vmem>>, vector<1x8x1xf32>
    %123 = vector.shape_cast %122 : vector<1x8x1xf32> to vector<8x1xf32>
    %124 = vector.broadcast %119 : vector<8x1xf32> to vector<8x256xf32>
    %125 = arith.addf %117, %124 : vector<8x256xf32>
    %126 = vector.shape_cast %125 : vector<8x256xf32> to vector<1x8x256xf32>
    %cst_69 = arith.constant dense<0.000000e+00> : vector<1xf32>
    %127 = vector.multi_reduction <add>, %126, %cst_69 [1, 2] : vector<1x8x256xf32> to vector<1xf32>
    %128 = vector.shape_cast %127 : vector<1xf32> to vector<1x1x1xf32>
    %129 = vector.extract %128[0, 0, 0] : f32 from vector<1x1x1xf32>
    %cst_70 = arith.constant 2.048000e+03 : f32
    %130 = arith.divf %129, %cst_70 : f32
    %131 = arith.mulf %125, %125 : vector<8x256xf32>
    %132 = vector.shape_cast %131 : vector<8x256xf32> to vector<1x8x256xf32>
    %cst_71 = arith.constant dense<0.000000e+00> : vector<1xf32>
    %133 = vector.multi_reduction <add>, %132, %cst_71 [1, 2] : vector<1x8x256xf32> to vector<1xf32>
    %134 = vector.shape_cast %133 : vector<1xf32> to vector<1x1x1xf32>
    %135 = vector.extract %134[0, 0, 0] : f32 from vector<1x1x1xf32>
    %cst_72 = arith.constant 2.048000e+03 : f32
    %136 = arith.divf %135, %cst_72 : f32
    %137 = arith.mulf %130, %130 : f32
    %138 = arith.subf %136, %137 : f32
    %139 = vector.broadcast %130 : f32 to vector<8x256xf32>
    %140 = arith.subf %125, %139 : vector<8x256xf32>
    %cst_73 = arith.constant 9.99999974E-6 : f32
    %141 = arith.addf %138, %cst_73 : f32
    %142 = math.rsqrt %141 : f32
    %143 = vector.broadcast %142 : f32 to vector<8x256xf32>
    %144 = arith.mulf %140, %143 : vector<8x256xf32>
    %145 = vector.broadcast %121 : vector<8x1xf32> to vector<8x256xf32>
    %146 = arith.mulf %144, %145 : vector<8x256xf32>
    %147 = vector.broadcast %123 : vector<8x1xf32> to vector<8x256xf32>
    %148 = arith.addf %146, %147 : vector<8x256xf32>
    %cst_74 = arith.constant 5.000000e-01 : f32
    %149 = vector.broadcast %cst_74 : f32 to vector<8x256xf32>
    %150 = arith.mulf %149, %148 : vector<8x256xf32>
    %cst_75 = arith.constant 4.471500e-02 : f32
    %151 = vector.broadcast %cst_75 : f32 to vector<8x256xf32>
    %152 = arith.mulf %151, %148 : vector<8x256xf32>
    %153 = arith.mulf %152, %148 : vector<8x256xf32>
    %154 = arith.mulf %153, %148 : vector<8x256xf32>
    %155 = arith.addf %148, %154 : vector<8x256xf32>
    %cst_76 = arith.constant 0.797884583 : f32
    %156 = vector.broadcast %cst_76 : f32 to vector<8x256xf32>
    %157 = arith.mulf %156, %155 : vector<8x256xf32>
    %158 = math.tanh %157 : vector<8x256xf32>
    %cst_77 = arith.constant 1.000000e+00 : f32
    %159 = vector.broadcast %cst_77 : f32 to vector<8x256xf32>
    %160 = arith.addf %159, %158 : vector<8x256xf32>
    %161 = arith.mulf %150, %160 : vector<8x256xf32>
    %c0_78 = arith.constant 0 : index
    %c0_79 = arith.constant 0 : index
    %162 = vector.load %arg5[%c0_78, %c0_79] : memref<8x8xf32, #tpu.memory_space<vmem>>, vector<8x8xf32>
    %cst_80 = arith.constant dense<0.000000e+00> : vector<8x256xf32>
    %163 = tpu.matmul %162, %3, %cst_80 {dimension_numbers = #tpu.dot_dimension_numbers<[1], [0], [0], [1], [0, 0, 1, 1], [], []>} : vector<8x8xf32>, vector<8x256xf32>, vector<8x256xf32> -> vector<8x256xf32>
    %164 = arith.addf %161, %163 : vector<8x256xf32>
    %c0_81 = arith.constant 0 : index
    %c0_82 = arith.constant 0 : index
    %165 = vector.load %arg6[%c0_81, %c0_82] : memref<8x1xf32, #tpu.memory_space<vmem>>, vector<8x1xf32>
    %166 = vector.broadcast %165 : vector<8x1xf32> to vector<8x256xf32>
    %167 = arith.addf %164, %166 : vector<8x256xf32>
    %c3_83 = arith.constant 3 : index
    %c0_84 = arith.constant 0 : index
    %c0_85 = arith.constant 0 : index
    %168 = vector.load %arg3[%c3_83, %c0_84, %c0_85] : memref<5x8x72xf32, #tpu.memory_space<vmem>>, vector<1x8x72xf32>
    %169 = vector.shape_cast %168 : vector<1x8x72xf32> to vector<8x72xf32>
    %c241_i32_86 = arith.constant 241 : i32
    %170 = tpu.dynamic_rotate %167 by %c241_i32_86 dim 1 : vector<8x256xf32>, i32 -> vector<8x256xf32>
    %c1_i32_87 = arith.constant 1 : i32
    %171 = tpu.dynamic_rotate %167 by %c1_i32_87 dim 1 : vector<8x256xf32>, i32 -> vector<8x256xf32>
    %172 = arith.select %22, %170, %171 : vector<8x256xi1>, vector<8x256xf32>
    %c15_i32_88 = arith.constant 15 : i32
    %173 = tpu.dynamic_rotate %167 by %c15_i32_88 dim 1 : vector<8x256xf32>, i32 -> vector<8x256xf32>
    %c255_i32_89 = arith.constant 255 : i32
    %174 = tpu.dynamic_rotate %167 by %c255_i32_89 dim 1 : vector<8x256xf32>, i32 -> vector<8x256xf32>
    %175 = arith.select %24, %173, %174 : vector<8x256xi1>, vector<8x256xf32>
    %c16_i32_90 = arith.constant 16 : i32
    %176 = tpu.dynamic_rotate %172 by %c16_i32_90 dim 1 : vector<8x256xf32>, i32 -> vector<8x256xf32>
    %c16_i32_91 = arith.constant 16 : i32
    %177 = tpu.dynamic_rotate %167 by %c16_i32_91 dim 1 : vector<8x256xf32>, i32 -> vector<8x256xf32>
    %c16_i32_92 = arith.constant 16 : i32
    %178 = tpu.dynamic_rotate %175 by %c16_i32_92 dim 1 : vector<8x256xf32>, i32 -> vector<8x256xf32>
    %c240_i32_93 = arith.constant 240 : i32
    %179 = tpu.dynamic_rotate %172 by %c240_i32_93 dim 1 : vector<8x256xf32>, i32 -> vector<8x256xf32>
    %c240_i32_94 = arith.constant 240 : i32
    %180 = tpu.dynamic_rotate %167 by %c240_i32_94 dim 1 : vector<8x256xf32>, i32 -> vector<8x256xf32>
    %c240_i32_95 = arith.constant 240 : i32
    %181 = tpu.dynamic_rotate %175 by %c240_i32_95 dim 1 : vector<8x256xf32>, i32 -> vector<8x256xf32>
    %182 = tpu.concatenate %176, %177, %178, %172, %167, %175, %179, %180, %181 in 0 : vector<8x256xf32>, vector<8x256xf32>, vector<8x256xf32>, vector<8x256xf32>, vector<8x256xf32>, vector<8x256xf32>, vector<8x256xf32>, vector<8x256xf32>, vector<8x256xf32> -> vector<72x256xf32>
    %cst_96 = arith.constant dense<0.000000e+00> : vector<8x256xf32>
    %183 = tpu.matmul %169, %182, %cst_96 {dimension_numbers = #tpu.dot_dimension_numbers<[1], [0], [0], [1], [0, 0, 1, 1], [], []>} : vector<8x72xf32>, vector<72x256xf32>, vector<8x256xf32> -> vector<8x256xf32>
    %c6 = arith.constant 6 : index
    %c0_97 = arith.constant 0 : index
    %c0_98 = arith.constant 0 : index
    %184 = vector.load %arg4[%c6, %c0_97, %c0_98] : memref<12x8x1xf32, #tpu.memory_space<vmem>>, vector<1x8x1xf32>
    %185 = vector.shape_cast %184 : vector<1x8x1xf32> to vector<8x1xf32>
    %c7 = arith.constant 7 : index
    %c0_99 = arith.constant 0 : index
    %c0_100 = arith.constant 0 : index
    %186 = vector.load %arg4[%c7, %c0_99, %c0_100] : memref<12x8x1xf32, #tpu.memory_space<vmem>>, vector<1x8x1xf32>
    %187 = vector.shape_cast %186 : vector<1x8x1xf32> to vector<8x1xf32>
    %c8 = arith.constant 8 : index
    %c0_101 = arith.constant 0 : index
    %c0_102 = arith.constant 0 : index
    %188 = vector.load %arg4[%c8, %c0_101, %c0_102] : memref<12x8x1xf32, #tpu.memory_space<vmem>>, vector<1x8x1xf32>
    %189 = vector.shape_cast %188 : vector<1x8x1xf32> to vector<8x1xf32>
    %190 = vector.broadcast %185 : vector<8x1xf32> to vector<8x256xf32>
    %191 = arith.addf %183, %190 : vector<8x256xf32>
    %192 = vector.shape_cast %191 : vector<8x256xf32> to vector<1x8x256xf32>
    %cst_103 = arith.constant dense<0.000000e+00> : vector<1xf32>
    %193 = vector.multi_reduction <add>, %192, %cst_103 [1, 2] : vector<1x8x256xf32> to vector<1xf32>
    %194 = vector.shape_cast %193 : vector<1xf32> to vector<1x1x1xf32>
    %195 = vector.extract %194[0, 0, 0] : f32 from vector<1x1x1xf32>
    %cst_104 = arith.constant 2.048000e+03 : f32
    %196 = arith.divf %195, %cst_104 : f32
    %197 = arith.mulf %191, %191 : vector<8x256xf32>
    %198 = vector.shape_cast %197 : vector<8x256xf32> to vector<1x8x256xf32>
    %cst_105 = arith.constant dense<0.000000e+00> : vector<1xf32>
    %199 = vector.multi_reduction <add>, %198, %cst_105 [1, 2] : vector<1x8x256xf32> to vector<1xf32>
    %200 = vector.shape_cast %199 : vector<1xf32> to vector<1x1x1xf32>
    %201 = vector.extract %200[0, 0, 0] : f32 from vector<1x1x1xf32>
    %cst_106 = arith.constant 2.048000e+03 : f32
    %202 = arith.divf %201, %cst_106 : f32
    %203 = arith.mulf %196, %196 : f32
    %204 = arith.subf %202, %203 : f32
    %205 = vector.broadcast %196 : f32 to vector<8x256xf32>
    %206 = arith.subf %191, %205 : vector<8x256xf32>
    %cst_107 = arith.constant 9.99999974E-6 : f32
    %207 = arith.addf %204, %cst_107 : f32
    %208 = math.rsqrt %207 : f32
    %209 = vector.broadcast %208 : f32 to vector<8x256xf32>
    %210 = arith.mulf %206, %209 : vector<8x256xf32>
    %211 = vector.broadcast %187 : vector<8x1xf32> to vector<8x256xf32>
    %212 = arith.mulf %210, %211 : vector<8x256xf32>
    %213 = vector.broadcast %189 : vector<8x1xf32> to vector<8x256xf32>
    %214 = arith.addf %212, %213 : vector<8x256xf32>
    %cst_108 = arith.constant 5.000000e-01 : f32
    %215 = vector.broadcast %cst_108 : f32 to vector<8x256xf32>
    %216 = arith.mulf %215, %214 : vector<8x256xf32>
    %cst_109 = arith.constant 4.471500e-02 : f32
    %217 = vector.broadcast %cst_109 : f32 to vector<8x256xf32>
    %218 = arith.mulf %217, %214 : vector<8x256xf32>
    %219 = arith.mulf %218, %214 : vector<8x256xf32>
    %220 = arith.mulf %219, %214 : vector<8x256xf32>
    %221 = arith.addf %214, %220 : vector<8x256xf32>
    %cst_110 = arith.constant 0.797884583 : f32
    %222 = vector.broadcast %cst_110 : f32 to vector<8x256xf32>
    %223 = arith.mulf %222, %221 : vector<8x256xf32>
    %224 = math.tanh %223 : vector<8x256xf32>
    %cst_111 = arith.constant 1.000000e+00 : f32
    %225 = vector.broadcast %cst_111 : f32 to vector<8x256xf32>
    %226 = arith.addf %225, %224 : vector<8x256xf32>
    %227 = arith.mulf %216, %226 : vector<8x256xf32>
    %c4_112 = arith.constant 4 : index
    %c0_113 = arith.constant 0 : index
    %c0_114 = arith.constant 0 : index
    %228 = vector.load %arg3[%c4_112, %c0_113, %c0_114] : memref<5x8x72xf32, #tpu.memory_space<vmem>>, vector<1x8x72xf32>
    %229 = vector.shape_cast %228 : vector<1x8x72xf32> to vector<8x72xf32>
    %c241_i32_115 = arith.constant 241 : i32
    %230 = tpu.dynamic_rotate %227 by %c241_i32_115 dim 1 : vector<8x256xf32>, i32 -> vector<8x256xf32>
    %c1_i32_116 = arith.constant 1 : i32
    %231 = tpu.dynamic_rotate %227 by %c1_i32_116 dim 1 : vector<8x256xf32>, i32 -> vector<8x256xf32>
    %232 = arith.select %22, %230, %231 : vector<8x256xi1>, vector<8x256xf32>
    %c15_i32_117 = arith.constant 15 : i32
    %233 = tpu.dynamic_rotate %227 by %c15_i32_117 dim 1 : vector<8x256xf32>, i32 -> vector<8x256xf32>
    %c255_i32_118 = arith.constant 255 : i32
    %234 = tpu.dynamic_rotate %227 by %c255_i32_118 dim 1 : vector<8x256xf32>, i32 -> vector<8x256xf32>
    %235 = arith.select %24, %233, %234 : vector<8x256xi1>, vector<8x256xf32>
    %c16_i32_119 = arith.constant 16 : i32
    %236 = tpu.dynamic_rotate %232 by %c16_i32_119 dim 1 : vector<8x256xf32>, i32 -> vector<8x256xf32>
    %c16_i32_120 = arith.constant 16 : i32
    %237 = tpu.dynamic_rotate %227 by %c16_i32_120 dim 1 : vector<8x256xf32>, i32 -> vector<8x256xf32>
    %c16_i32_121 = arith.constant 16 : i32
    %238 = tpu.dynamic_rotate %235 by %c16_i32_121 dim 1 : vector<8x256xf32>, i32 -> vector<8x256xf32>
    %c240_i32_122 = arith.constant 240 : i32
    %239 = tpu.dynamic_rotate %232 by %c240_i32_122 dim 1 : vector<8x256xf32>, i32 -> vector<8x256xf32>
    %c240_i32_123 = arith.constant 240 : i32
    %240 = tpu.dynamic_rotate %227 by %c240_i32_123 dim 1 : vector<8x256xf32>, i32 -> vector<8x256xf32>
    %c240_i32_124 = arith.constant 240 : i32
    %241 = tpu.dynamic_rotate %235 by %c240_i32_124 dim 1 : vector<8x256xf32>, i32 -> vector<8x256xf32>
    %242 = tpu.concatenate %236, %237, %238, %232, %227, %235, %239, %240, %241 in 0 : vector<8x256xf32>, vector<8x256xf32>, vector<8x256xf32>, vector<8x256xf32>, vector<8x256xf32>, vector<8x256xf32>, vector<8x256xf32>, vector<8x256xf32>, vector<8x256xf32> -> vector<72x256xf32>
    %cst_125 = arith.constant dense<0.000000e+00> : vector<8x256xf32>
    %243 = tpu.matmul %229, %242, %cst_125 {dimension_numbers = #tpu.dot_dimension_numbers<[1], [0], [0], [1], [0, 0, 1, 1], [], []>} : vector<8x72xf32>, vector<72x256xf32>, vector<8x256xf32> -> vector<8x256xf32>
    %c9 = arith.constant 9 : index
    %c0_126 = arith.constant 0 : index
    %c0_127 = arith.constant 0 : index
    %244 = vector.load %arg4[%c9, %c0_126, %c0_127] : memref<12x8x1xf32, #tpu.memory_space<vmem>>, vector<1x8x1xf32>
    %245 = vector.shape_cast %244 : vector<1x8x1xf32> to vector<8x1xf32>
    %c10 = arith.constant 10 : index
    %c0_128 = arith.constant 0 : index
    %c0_129 = arith.constant 0 : index
    %246 = vector.load %arg4[%c10, %c0_128, %c0_129] : memref<12x8x1xf32, #tpu.memory_space<vmem>>, vector<1x8x1xf32>
    %247 = vector.shape_cast %246 : vector<1x8x1xf32> to vector<8x1xf32>
    %c11 = arith.constant 11 : index
    %c0_130 = arith.constant 0 : index
    %c0_131 = arith.constant 0 : index
    %248 = vector.load %arg4[%c11, %c0_130, %c0_131] : memref<12x8x1xf32, #tpu.memory_space<vmem>>, vector<1x8x1xf32>
    %249 = vector.shape_cast %248 : vector<1x8x1xf32> to vector<8x1xf32>
    %250 = vector.broadcast %245 : vector<8x1xf32> to vector<8x256xf32>
    %251 = arith.addf %243, %250 : vector<8x256xf32>
    %252 = vector.shape_cast %251 : vector<8x256xf32> to vector<1x8x256xf32>
    %cst_132 = arith.constant dense<0.000000e+00> : vector<1xf32>
    %253 = vector.multi_reduction <add>, %252, %cst_132 [1, 2] : vector<1x8x256xf32> to vector<1xf32>
    %254 = vector.shape_cast %253 : vector<1xf32> to vector<1x1x1xf32>
    %255 = vector.extract %254[0, 0, 0] : f32 from vector<1x1x1xf32>
    %cst_133 = arith.constant 2.048000e+03 : f32
    %256 = arith.divf %255, %cst_133 : f32
    %257 = arith.mulf %251, %251 : vector<8x256xf32>
    %258 = vector.shape_cast %257 : vector<8x256xf32> to vector<1x8x256xf32>
    %cst_134 = arith.constant dense<0.000000e+00> : vector<1xf32>
    %259 = vector.multi_reduction <add>, %258, %cst_134 [1, 2] : vector<1x8x256xf32> to vector<1xf32>
    %260 = vector.shape_cast %259 : vector<1xf32> to vector<1x1x1xf32>
    %261 = vector.extract %260[0, 0, 0] : f32 from vector<1x1x1xf32>
    %cst_135 = arith.constant 2.048000e+03 : f32
    %262 = arith.divf %261, %cst_135 : f32
    %263 = arith.mulf %256, %256 : f32
    %264 = arith.subf %262, %263 : f32
    %265 = vector.broadcast %256 : f32 to vector<8x256xf32>
    %266 = arith.subf %251, %265 : vector<8x256xf32>
    %cst_136 = arith.constant 9.99999974E-6 : f32
    %267 = arith.addf %264, %cst_136 : f32
    %268 = math.rsqrt %267 : f32
    %269 = vector.broadcast %268 : f32 to vector<8x256xf32>
    %270 = arith.mulf %266, %269 : vector<8x256xf32>
    %271 = vector.broadcast %247 : vector<8x1xf32> to vector<8x256xf32>
    %272 = arith.mulf %270, %271 : vector<8x256xf32>
    %273 = vector.broadcast %249 : vector<8x1xf32> to vector<8x256xf32>
    %274 = arith.addf %272, %273 : vector<8x256xf32>
    %cst_137 = arith.constant 5.000000e-01 : f32
    %275 = vector.broadcast %cst_137 : f32 to vector<8x256xf32>
    %276 = arith.mulf %275, %274 : vector<8x256xf32>
    %cst_138 = arith.constant 4.471500e-02 : f32
    %277 = vector.broadcast %cst_138 : f32 to vector<8x256xf32>
    %278 = arith.mulf %277, %274 : vector<8x256xf32>
    %279 = arith.mulf %278, %274 : vector<8x256xf32>
    %280 = arith.mulf %279, %274 : vector<8x256xf32>
    %281 = arith.addf %274, %280 : vector<8x256xf32>
    %cst_139 = arith.constant 0.797884583 : f32
    %282 = vector.broadcast %cst_139 : f32 to vector<8x256xf32>
    %283 = arith.mulf %282, %281 : vector<8x256xf32>
    %284 = math.tanh %283 : vector<8x256xf32>
    %cst_140 = arith.constant 1.000000e+00 : f32
    %285 = vector.broadcast %cst_140 : f32 to vector<8x256xf32>
    %286 = arith.addf %285, %284 : vector<8x256xf32>
    %287 = arith.mulf %276, %286 : vector<8x256xf32>
    %288 = arith.addf %287, %167 : vector<8x256xf32>
    %289 = vector.shape_cast %288 : vector<8x256xf32> to vector<1x8x256xf32>
    %c0_141 = arith.constant 0 : index
    %c0_142 = arith.constant 0 : index
    %c0_143 = arith.constant 0 : index
    %290 = vector.load %arg7[%c0_141, %c0_142, %c0_143] : memref<1x8x256xf32, #tpu.memory_space<vmem>>, vector<1x8x256xf32>
    tpu.vector_store %arg7[%c0_141, %c0_142, %c0_143], %289 {strides = array<i32>} : memref<1x8x256xf32, #tpu.memory_space<vmem>>, vector<1x8x256xf32>,
    return
  }
  func.func @transform_0(%arg0: i32) -> (i32, i32, i32) {
    %c0_i32 = arith.constant 0 : i32
    %c0_i32_0 = arith.constant 0 : i32
    %c0_i32_1 = arith.constant 0 : i32
    return %arg0, %c0_i32, %c0_i32_0 : i32, i32, i32
  }
  func.func @transform_1(%arg0: i32) -> (i32, i32, i32) {
    %c0_i32 = arith.constant 0 : i32
    %c0_i32_0 = arith.constant 0 : i32
    %c0_i32_1 = arith.constant 0 : i32
    return %arg0, %c0_i32, %c0_i32_0 : i32, i32, i32
  }
  func.func @transform_2(%arg0: i32) -> (i32, i32, i32) {
    %c0_i32 = arith.constant 0 : i32
    %c0_i32_0 = arith.constant 0 : i32
    %c0_i32_1 = arith.constant 0 : i32
    %c0_i32_2 = arith.constant 0 : i32
    return %c0_i32, %c0_i32_0, %c0_i32_1 : i32, i32, i32
  }
  func.func @transform_3(%arg0: i32) -> (i32, i32, i32) {
    %c0_i32 = arith.constant 0 : i32
    %c0_i32_0 = arith.constant 0 : i32
    %c0_i32_1 = arith.constant 0 : i32
    %c0_i32_2 = arith.constant 0 : i32
    return %c0_i32, %c0_i32_0, %c0_i32_1 : i32, i32, i32
  }
  func.func @transform_4(%arg0: i32) -> (i32, i32) {
    %c0_i32 = arith.constant 0 : i32
    %c0_i32_0 = arith.constant 0 : i32
    %c0_i32_1 = arith.constant 0 : i32
    return %c0_i32, %c0_i32_0 : i32, i32
  }
  func.func @transform_5(%arg0: i32) -> (i32, i32) {
    %c0_i32 = arith.constant 0 : i32
    %c0_i32_0 = arith.constant 0 : i32
    %c0_i32_1 = arith.constant 0 : i32
    return %c0_i32, %c0_i32_0 : i32, i32
  }
  func.func @transform_6(%arg0: i32) -> (i32, i32, i32) {
    %c0_i32 = arith.constant 0 : i32
    %c0_i32_0 = arith.constant 0 : i32
    %c0_i32_1 = arith.constant 0 : i32
    return %arg0, %c0_i32, %c0_i32_0 : i32, i32, i32
  }
}

</mosaic_0001>

<llo_original>
// kernel: up_forward.1
$region0: #{up_forward.1}
  #allocation0 [shape = 'u32[]', space=smem, size = 0x4, offset = 0x4, fixed_abs, tag = 'smem constant byte address 0x4 - core index']
  #allocation1 [shape = 'u32[144,128]{1,0:T(1,128)}', space=vmem, size = 0x12000, scoped, tag = 'internal scratch']
  %s0 = inlined_call_operand.vmem [shape: f32[2,8,256], index: 0, kind: input, shape index: {}]
  %s1 = inlined_call_operand.vmem [shape: f32[2,8,256], index: 1, kind: input, shape index: {}]
  %s2 = inlined_call_operand.vmem [shape: f32[5,8,72], index: 2, kind: input, shape index: {}]
  %s3 = inlined_call_operand.vmem [shape: f32[12,8,1], index: 3, kind: input, shape index: {}]
  %s4 = inlined_call_operand.vmem [shape: f32[8,8], index: 4, kind: input, shape index: {}]
  %s5 = inlined_call_operand.vmem [shape: f32[8,1], index: 5, kind: input, shape index: {}]
  %s6 = inlined_call_operand.vmem [shape: f32[2,8,256], index: 6, kind: output, shape index: {}]
  %s7 = sld [smem:[#allocation0]]
  $region57: #{up_forward.1} parent=0
    _
  %s9 = ssub.s32 1, %s7
  %s10 = scalar_select 0, %s9, %s7
  loop: start=0, step=1, limit=4
  $region2: #{up_forward.1} parent=0 // loop_pre_header
    _
  $region3: #{up_forward.1} parent=0 // loop_header
    %s12 = sphi 0, %s16
    %p13 = scmp.ge.s32.totalorder %s12, 4
    %s22 = sphi 0, %s24
    %s25 = sphi 0, %s22
    %s26 = sphi 0, %s25
    %s42 = sphi 0, %s26
    %s48 = sphi 0, %s50
    %s51 = sphi 0, %s48
    %s52 = sphi 0, %s51
    %s68 = sphi 0, %s52
    %s72 = sphi 0, %s72
    %s74 = sphi 0, %s72
    %s75 = sphi 0, %s74
    %s89 = sphi 0, %s75
    %s93 = sphi 0, %s93
    %s95 = sphi 0, %s93
    %s96 = sphi 0, %s95
    %s110 = sphi 0, %s96
    %s114 = sphi 0, %s114
    %s116 = sphi 0, %s114
    %s117 = sphi 0, %s116
    %s131 = sphi 0, %s117
    %s135 = sphi 0, %s135
    %s137 = sphi 0, %s135
    %s138 = sphi 0, %s137
    %s152 = sphi 0, %s138
    %s158 = sphi 0, %s160
    %s161 = sphi 0, %s158
    %s162 = sphi 0, %s161
    %s178 = sphi 0, %s162
  $region4: #{up_forward.1} parent=0 // loop_header_branch
    %15 = sbr.rel (%p13) target = $region8
  $region5: #{up_forward.1} parent=0 // loop_body
    %s17 = ssub.s32 %s12, 1
    %s18 = ssub.s32 %s12, 2
    %s19 = sadd.s32 %s12, 1
    %s20 = ssub.s32 %s12, %s19
    %p21 = scmp.eq.s32.totalorder %s20, 0
    %s23 = sadd.s32 %s22, 1
    %s24 = scalar_select %p21, %s22, %s23
    %p27 = pneg %p21
    %p28 = scmp.eq.s32.totalorder %s12, 1
    %p29 = por %p27, %p28
    %p30 = scmp.ne.s32.totalorder %s22, %s25
    %p31 = scmp.eq.s32.totalorder %s12, 0
    %p32 = por %p30, %p31
    %p33 = scmp.ne.s32.totalorder %s22, %s25
    %p34 = scmp.eq.s32.totalorder %s17, 1
    %p35 = por %p33, %p34
    %p36 = scmp.ne.s32.totalorder %s25, %s26
    %p37 = scmp.eq.s32.totalorder %s17, 0
    %p38 = por %p36, %p37
    %p39 = scmp.ne.s32.totalorder %s25, %s26
    %p40 = scmp.eq.s32.totalorder %s18, 1
    %p41 = por %p39, %p40
    %p43 = scmp.ne.s32.totalorder %s26, %s42
    %p44 = scmp.eq.s32.totalorder %s18, 0
    %p45 = por %p43, %p44
    %s46 = ssub.s32 %s12, %s19
    %p47 = scmp.eq.s32.totalorder %s46, 0
    %s49 = sadd.s32 %s48, 1
    %s50 = scalar_select %p47, %s48, %s49
    %p53 = pneg %p47
    %p54 = scmp.eq.s32.totalorder %s12, 1
    %p55 = por %p53, %p54
    %p56 = scmp.ne.s32.totalorder %s48, %s51
    %p57 = scmp.eq.s32.totalorder %s12, 0
    %p58 = por %p56, %p57
    %p59 = scmp.ne.s32.totalorder %s48, %s51
    %p60 = scmp.eq.s32.totalorder %s17, 1
    %p61 = por %p59, %p60
    %p62 = scmp.ne.s32.totalorder %s51, %s52
    %p63 = scmp.eq.s32.totalorder %s17, 0
    %p64 = por %p62, %p63
    %p65 = scmp.ne.s32.totalorder %s51, %s52
    %p66 = scmp.eq.s32.totalorder %s18, 1
    %p67 = por %p65, %p66
    %p69 = scmp.ne.s32.totalorder %s52, %s68
    %p70 = scmp.eq.s32.totalorder %s18, 0
    %p71 = por %p69, %p70
    %s73 = sadd.s32 %s72, 1
    %p76 = scmp.eq.s32.totalorder %s12, 1
    %p77 = scmp.ne.s32.totalorder %s72, %s74
    %p78 = scmp.eq.s32.totalorder %s12, 0
    %p79 = por %p77, %p78
    %p80 = scmp.ne.s32.totalorder %s72, %s74
    %p81 = scmp.eq.s32.totalorder %s17, 1
    %p82 = por %p80, %p81
    %p83 = scmp.ne.s32.totalorder %s74, %s75
    %p84 = scmp.eq.s32.totalorder %s17, 0
    %p85 = por %p83, %p84
    %p86 = scmp.ne.s32.totalorder %s74, %s75
    %p87 = scmp.eq.s32.totalorder %s18, 1
    %p88 = por %p86, %p87
    %p90 = scmp.ne.s32.totalorder %s75, %s89
    %p91 = scmp.eq.s32.totalorder %s18, 0
    %p92 = por %p90, %p91
    %s94 = sadd.s32 %s93, 1
    %p97 = scmp.eq.s32.totalorder %s12, 1
    %p98 = scmp.ne.s32.totalorder %s93, %s95
    %p99 = scmp.eq.s32.totalorder %s12, 0
    %p100 = por %p98, %p99
    %p101 = scmp.ne.s32.totalorder %s93, %s95
    %p102 = scmp.eq.s32.totalorder %s17, 1
    %p103 = por %p101, %p102
    %p104 = scmp.ne.s32.totalorder %s95, %s96
    %p105 = scmp.eq.s32.totalorder %s17, 0
    %p106 = por %p104, %p105
    %p107 = scmp.ne.s32.totalorder %s95, %s96
    %p108 = scmp.eq.s32.totalorder %s18, 1
    %p109 = por %p107, %p108
    %p111 = scmp.ne.s32.totalorder %s96, %s110
    %p112 = scmp.eq.s32.totalorder %s18, 0
    %p113 = por %p111, %p112
    %s115 = sadd.s32 %s114, 1
    %p118 = scmp.eq.s32.totalorder %s12, 1
    %p119 = scmp.ne.s32.totalorder %s114, %s116
    %p120 = scmp.eq.s32.totalorder %s12, 0
    %p121 = por %p119, %p120
    %p122 = scmp.ne.s32.totalorder %s114, %s116
    %p123 = scmp.eq.s32.totalorder %s17, 1
    %p124 = por %p122, %p123
    %p125 = scmp.ne.s32.totalorder %s116, %s117
    %p126 = scmp.eq.s32.totalorder %s17, 0
    %p127 = por %p125, %p126
    %p128 = scmp.ne.s32.totalorder %s116, %s117
    %p129 = scmp.eq.s32.totalorder %s18, 1
    %p130 = por %p128, %p129
    %p132 = scmp.ne.s32.totalorder %s117, %s131
    %p133 = scmp.eq.s32.totalorder %s18, 0
    %p134 = por %p132, %p133
    %s136 = sadd.s32 %s135, 1
    %p139 = scmp.eq.s32.totalorder %s12, 1
    %p140 = scmp.ne.s32.totalorder %s135, %s137
    %p141 = scmp.eq.s32.totalorder %s12, 0
    %p142 = por %p140, %p141
    %p143 = scmp.ne.s32.totalorder %s135, %s137
    %p144 = scmp.eq.s32.totalorder %s17, 1
    %p145 = por %p143, %p144
    %p146 = scmp.ne.s32.totalorder %s137, %s138
    %p147 = scmp.eq.s32.totalorder %s17, 0
    %p148 = por %p146, %p147
    %p149 = scmp.ne.s32.totalorder %s137, %s138
    %p150 = scmp.eq.s32.totalorder %s18, 1
    %p151 = por %p149, %p150
    %p153 = scmp.ne.s32.totalorder %s138, %s152
    %p154 = scmp.eq.s32.totalorder %s18, 0
    %p155 = por %p153, %p154
    %s156 = ssub.s32 %s12, %s19
    %p157 = scmp.eq.s32.totalorder %s156, 0
    %s159 = sadd.s32 %s158, 1
    %s160 = scalar_select %p157, %s158, %s159
    %p163 = pneg %p157
    %p164 = scmp.eq.s32.totalorder %s12, 1
    %p165 = por %p163, %p164
    %p166 = scmp.ne.s32.totalorder %s158, %s161
    %p167 = scmp.eq.s32.totalorder %s12, 0
    %p168 = por %p166, %p167
    %p169 = scmp.ne.s32.totalorder %s158, %s161
    %p170 = scmp.eq.s32.totalorder %s17, 1
    %p171 = por %p169, %p170
    %p172 = scmp.ne.s32.totalorder %s161, %s162
    %p173 = scmp.eq.s32.totalorder %s17, 0
    %p174 = por %p172, %p173
    %p175 = scmp.ne.s32.totalorder %s161, %s162
    %p176 = scmp.eq.s32.totalorder %s18, 1
    %p177 = por %p175, %p176
    %p179 = scmp.ne.s32.totalorder %s162, %s178
    %p180 = scmp.eq.s32.totalorder %s18, 0
    %p181 = por %p179, %p180
    %p182 = scmp.le.s32.totalorder 1, %s12
    %p183 = scmp.lt.s32.totalorder %s12, 3
    %p184 = pnand %p182, %p183
    %p185 = pneg %p184
    // Predicated region
    $region9: #{up_forward.1} parent=5 // pred_check
      _
    $region10: #{up_forward.1} parent=5 // pred_check_branch
      %187 = sbr.rel (%p184) target = $region12
    $region11: #{up_forward.1} parent=5 // pred_region
      %s188 = ssub.s32 %s12, 1
      // Predicated region
      $region13: #{up_forward.1} parent=11 // pred_check
        %p189 = pneg %p85
      $region14: #{up_forward.1} parent=11 // pred_check_branch
        %191 = sbr.rel (%p189) target = $region16
      $region15: #{up_forward.1} parent=11 // pred_region
        _
      $region16: #{up_forward.1} parent=11 // pred_fallthru
        _
      // Predicated region
      $region17: #{up_forward.1} parent=11 // pred_check
        %p192 = pneg %p106
      $region18: #{up_forward.1} parent=11 // pred_check_branch
        %194 = sbr.rel (%p192) target = $region20
      $region19: #{up_forward.1} parent=11 // pred_region
        _
      $region20: #{up_forward.1} parent=11 // pred_fallthru
        _
      // Predicated region
      $region21: #{up_forward.1} parent=11 // pred_check
        %p195 = pneg %p127
      $region22: #{up_forward.1} parent=11 // pred_check_branch
        %197 = sbr.rel (%p195) target = $region24
      $region23: #{up_forward.1} parent=11 // pred_region
        _
      $region24: #{up_forward.1} parent=11 // pred_fallthru
        _
      // Predicated region
      $region25: #{up_forward.1} parent=11 // pred_check
        %p198 = pneg %p148
      $region26: #{up_forward.1} parent=11 // pred_check_branch
        %200 = sbr.rel (%p198) target = $region28
      $region27: #{up_forward.1} parent=11 // pred_region
        _
      $region28: #{up_forward.1} parent=11 // pred_fallthru
        _
    $region12: #{up_forward.1} parent=5 // pred_fallthru
      _
    %p201 = scmp.lt.s32.totalorder %s12, 2
    // Predicated region
    $region29: #{up_forward.1} parent=5 // pred_check
      %p202 = pneg %p201
    $region30: #{up_forward.1} parent=5 // pred_check_branch
      %204 = sbr.rel (%p202) target = $region32
    $region31: #{up_forward.1} parent=5 // pred_region
      // Predicated region
      $region33: #{up_forward.1} parent=31 // pred_check
        %p205 = pneg %p32
      $region34: #{up_forward.1} parent=31 // pred_check_branch
        %207 = sbr.rel (%p205) target = $region36
      $region35: #{up_forward.1} parent=31 // pred_region
        %p208 = scmp.lt.s32.totalorder %s12, 1
        %s209 = scalar_select %p208, %s12, 1
        %s210 = smul.addr %s209, 2
        %s211 = smul.addr %s210, 8
        %s212 = scalar_lea.vmem %s0, %s211
      $region36: #{up_forward.1} parent=31 // pred_fallthru
        _
      // Predicated region
      $region37: #{up_forward.1} parent=31 // pred_check
        %p213 = pneg %p58
      $region38: #{up_forward.1} parent=31 // pred_check_branch
        %215 = sbr.rel (%p213) target = $region40
      $region39: #{up_forward.1} parent=31 // pred_region
        %p216 = scmp.lt.s32.totalorder %s12, 1
        %s217 = scalar_select %p216, %s12, 1
        %s218 = smul.addr %s217, 2
        %s219 = smul.addr %s218, 8
        %s220 = scalar_lea.vmem %s1, %s219
      $region40: #{up_forward.1} parent=31 // pred_fallthru
        _
    $region32: #{up_forward.1} parent=5 // pred_fallthru
      _
    %p221 = scmp.le.s32.totalorder 1, %s12
    %p222 = scmp.lt.s32.totalorder %s12, 3
    %p223 = pnand %p221, %p222
    %p224 = pneg %p223
    // Predicated region
    $region41: #{up_forward.1} parent=5 // pred_check
      _
    $region42: #{up_forward.1} parent=5 // pred_check_branch
      %226 = sbr.rel (%p223) target = $region44
    $region43: #{up_forward.1} parent=5 // pred_region
      %s227 = ssub.s32 %s12, 1
      %p228 = scmp.lt.s32.totalorder %s17, 1
      %s229 = scalar_select %p228, %s17, 1
      %s230 = smul.addr %s229, 2
      %s231 = smul.addr %s230, 8
      %s232 = scalar_lea.vmem %s0, %s231
      %p233 = pneg %p38
      %p234 = pneg %p35
      %p235 = scmp.lt.s32.totalorder %s17, 1
      %s236 = scalar_select %p235, %s17, 1
      %s237 = smul.addr %s236, 2
      %s238 = smul.addr %s237, 8
      %s239 = scalar_lea.vmem %s1, %s238
      %p240 = pneg %p64
      %p241 = pneg %p61
      %p242 = pneg %p85
      %p243 = pneg %p82
      %p244 = pneg %p106
      %p245 = pneg %p103
      %p246 = pneg %p127
      %p247 = pneg %p124
      %p248 = pneg %p148
      %p249 = pneg %p145
      %p250 = pneg %p174
      %p251 = pneg %p171
      %p252 = scmp.lt.s32.totalorder %s17, 1
      %s253 = scalar_select %p252, %s17, 1
      %s254 = smul.addr %s253, 2
      %s255 = smul.addr %s254, 8
      %s256 = scalar_lea.vmem %s6, %s255
      %p257 = scmp.lt.s32.totalorder %s17, 1
      %s258 = scalar_select %p257, %s17, 1
      %s259 = smul.addr %s258, 2
      %s260 = smul.addr %s259, 8
      %s261 = scalar_lea.vmem %s0, %s260
      %p262 = scmp.lt.s32.totalorder %s17, 1
      %s263 = scalar_select %p262, %s17, 1
      %s264 = smul.addr %s263, 2
      %s265 = smul.addr %s264, 8
      %s266 = scalar_lea.vmem %s1, %s265
      %p267 = scmp.lt.s32.totalorder %s17, 1
      %s268 = scalar_select %p267, %s17, 1
      %s269 = smul.addr %s268, 2
      %s270 = smul.addr %s269, 8
      %s271 = scalar_lea.vmem %s6, %s270
      %v272 = vld [vmem:[%s261] sm:$0xff]
      %v273 = vld [vmem:[%s261 + $0x8] sm:$0xff]
      %v274 = vld [vmem:[%s266] sm:$0xff]
      %v275 = vld [vmem:[%s266 + $0x8] sm:$0xff]
      %v276 = vlaneseq
      %v277 = vand.u32 %v276, 127
      %v278 = vadd.s32 %v277, 128
      %vm279 = vcmp.lt.s32.totalorder %v277, 0
      %v280 = vsub.s32 0, %v277
      %v281 = vsel %vm279, %v280, %v277
      %v282 = vshrl.u32 %v281, 4
      %v283 = vand.u32 %v281, 15
      %v284 = vsub.s32 0, %v283
      %v285 = vsel %vm279, %v284, %v283
      %vm286 = vcmp.lt.s32.totalorder %v278, 0
      %v287 = vsub.s32 0, %v278
      %v288 = vsel %vm286, %v287, %v278
      %v289 = vshrl.u32 %v288, 4
      %v290 = vand.u32 %v288, 15
      %v291 = vsub.s32 0, %v290
      %v292 = vsel %vm286, %v291, %v290
      %vm293 = vcmp.ne.s32.totalorder %v285, 0
      %vm294 = vcmp.ne.s32.totalorder %v292, 0
      %vm295 = vcmp.lt.s32.totalorder %v285, 0
      %vm296 = vcmp.lt.s32.totalorder %v292, 0
      %vm297 = vmand %vm295, %vm293
      %vm298 = vmand %vm296, %vm294
      %v299 = vadd.s32 %v285, 16
      %v300 = vadd.s32 %v292, 16
      %v301 = vsel %vm297, %v299, %v285
      %v302 = vsel %vm298, %v300, %v292
      %vm303 = vcmp.eq.s32.totalorder %v301, 0
      %vm304 = vcmp.eq.s32.totalorder %v302, 0
      %vm305 = vcmp.eq.s32.totalorder %v301, 15
      %vm306 = vcmp.eq.s32.totalorder %v302, 15
      %v307 = vld [vmem:[%s2] sm:$0xff]
      %308 = vrot.lane.b32.xlu0 %v272, 113
      %v309 = vpop.permute.xlu0 %308
      %310 = vrot.lane.b32.xlu0 %v273, 113
      %v311 = vpop.permute.xlu0 %310
      %vm312 = vcmp.lt.s32.totalorder %v277, 113
      %v313 = vsel %vm312, %v309, %v311
      %v314 = vsel %vm312, %v311, %v309
      %315 = vrot.lane.b32.xlu0 %v272, 1
      %v316 = vpop.permute.xlu0 %315
      %317 = vrot.lane.b32.xlu0 %v273, 1
      %v318 = vpop.permute.xlu0 %317
      %vm319 = vcmp.lt.s32.totalorder %v277, 1
      %v320 = vsel %vm319, %v316, %v318
      %v321 = vsel %vm319, %v318, %v316
      %v322 = vsel %vm303, %v313, %v321
      %v323 = vsel %vm304, %v314, %v320
      %324 = vrot.lane.b32.xlu0 %v272, 15
      %v325 = vpop.permute.xlu0 %324
      %326 = vrot.lane.b32.xlu0 %v273, 15
      %v327 = vpop.permute.xlu0 %326
      %vm328 = vcmp.lt.s32.totalorder %v277, 15
      %v329 = vsel %vm328, %v325, %v327
      %v330 = vsel %vm328, %v327, %v325
      %331 = vrot.lane.b32.xlu0 %v272, 127
      %v332 = vpop.permute.xlu0 %331
      %333 = vrot.lane.b32.xlu0 %v273, 127
      %v334 = vpop.permute.xlu0 %333
      %vm335 = vcmp.lt.s32.totalorder %v277, 127
      %v336 = vsel %vm335, %v332, %v334
      %v337 = vsel %vm335, %v334, %v332
      %v338 = vsel %vm305, %v330, %v336
      %v339 = vsel %vm306, %v329, %v337
      %340 = vrot.lane.b32.xlu0 %v322, 16
      %v341 = vpop.permute.xlu0 %340
      %342 = vrot.lane.b32.xlu0 %v323, 16
      %v343 = vpop.permute.xlu0 %342
      %vm344 = vcmp.lt.s32.totalorder %v277, 16
      %v345 = vsel %vm344, %v341, %v343
      %v346 = vsel %vm344, %v343, %v341
      %347 = vrot.lane.b32.xlu0 %v272, 16
      %v348 = vpop.permute.xlu0 %347
      %349 = vrot.lane.b32.xlu0 %v273, 16
      %v350 = vpop.permute.xlu0 %349
      %v351 = vsel %vm344, %v348, %v350
      %v352 = vsel %vm344, %v350, %v348
      %353 = vrot.lane.b32.xlu0 %v338, 16
      %v354 = vpop.permute.xlu0 %353
      %355 = vrot.lane.b32.xlu0 %v339, 16
      %v356 = vpop.permute.xlu0 %355
      %v357 = vsel %vm344, %v354, %v356
      %v358 = vsel %vm344, %v356, %v354
      %359 = vrot.lane.b32.xlu0 %v322, 112
      %v360 = vpop.permute.xlu0 %359
      %361 = vrot.lane.b32.xlu0 %v323, 112
      %v362 = vpop.permute.xlu0 %361
      %vm363 = vcmp.lt.s32.totalorder %v277, 112
      %v364 = vsel %vm363, %v360, %v362
      %v365 = vsel %vm363, %v362, %v360
      %366 = vrot.lane.b32.xlu0 %v272, 112
      %v367 = vpop.permute.xlu0 %366
      %368 = vrot.lane.b32.xlu0 %v273, 112
      %v369 = vpop.permute.xlu0 %368
      %v370 = vsel %vm363, %v367, %v369
      %v371 = vsel %vm363, %v369, %v367
      %372 = vrot.lane.b32.xlu0 %v338, 112
      %v373 = vpop.permute.xlu0 %372
      %374 = vrot.lane.b32.xlu0 %v339, 112
      %v375 = vpop.permute.xlu0 %374
      %v376 = vsel %vm363, %v373, %v375
      %v377 = vsel %vm363, %v375, %v373
      %s378 = scalar_lea.vmem %s2, 8
      %v379 = vld [vmem:[%s378] sm:$0xff]
      %380 = vrot.lane.b32.xlu0 %v274, 113
      %v381 = vpop.permute.xlu0 %380
      %382 = vrot.lane.b32.xlu0 %v275, 113
      %v383 = vpop.permute.xlu0 %382
      %v384 = vsel %vm312, %v381, %v383
      %v385 = vsel %vm312, %v383, %v381
      %386 = vrot.lane.b32.xlu0 %v274, 1
      %v387 = vpop.permute.xlu0 %386
      %388 = vrot.lane.b32.xlu0 %v275, 1
      %v389 = vpop.permute.xlu0 %388
      %v390 = vsel %vm319, %v387, %v389
      %v391 = vsel %vm319, %v389, %v387
      %v392 = vsel %vm303, %v384, %v391
      %v393 = vsel %vm304, %v385, %v390
      %394 = vrot.lane.b32.xlu0 %v274, 15
      %v395 = vpop.permute.xlu0 %394
      %396 = vrot.lane.b32.xlu0 %v275, 15
      %v397 = vpop.permute.xlu0 %396
      %v398 = vsel %vm328, %v395, %v397
      %v399 = vsel %vm328, %v397, %v395
      %400 = vrot.lane.b32.xlu0 %v274, 127
      %v401 = vpop.permute.xlu0 %400
      %402 = vrot.lane.b32.xlu0 %v275, 127
      %v403 = vpop.permute.xlu0 %402
      %v404 = vsel %vm335, %v401, %v403
      %v405 = vsel %vm335, %v403, %v401
      %v406 = vsel %vm305, %v399, %v404
      %v407 = vsel %vm306, %v398, %v405
      %408 = vrot.lane.b32.xlu0 %v392, 16
      %v409 = vpop.permute.xlu0 %408
      %410 = vrot.lane.b32.xlu0 %v393, 16
      %v411 = vpop.permute.xlu0 %410
      %v412 = vsel %vm344, %v409, %v411
      %v413 = vsel %vm344, %v411, %v409
      %414 = vrot.lane.b32.xlu0 %v274, 16
      %v415 = vpop.permute.xlu0 %414
      %416 = vrot.lane.b32.xlu0 %v275, 16
      %v417 = vpop.permute.xlu0 %416
      %v418 = vsel %vm344, %v415, %v417
      %v419 = vsel %vm344, %v417, %v415
      %420 = vrot.lane.b32.xlu0 %v406, 16
      %v421 = vpop.permute.xlu0 %420
      %422 = vrot.lane.b32.xlu0 %v407, 16
      %v423 = vpop.permute.xlu0 %422
      %v424 = vsel %vm344, %v421, %v423
      %v425 = vsel %vm344, %v423, %v421
      %426 = vrot.lane.b32.xlu0 %v392, 112
      %v427 = vpop.permute.xlu0 %426
      %428 = vrot.lane.b32.xlu0 %v393, 112
      %v429 = vpop.permute.xlu0 %428
      %v430 = vsel %vm363, %v427, %v429
      %v431 = vsel %vm363, %v429, %v427
      %432 = vrot.lane.b32.xlu0 %v274, 112
      %v433 = vpop.permute.xlu0 %432
      %434 = vrot.lane.b32.xlu0 %v275, 112
      %v435 = vpop.permute.xlu0 %434
      %v436 = vsel %vm363, %v433, %v435
      %v437 = vsel %vm363, %v435, %v433
      %438 = vrot.lane.b32.xlu0 %v406, 112
      %v439 = vpop.permute.xlu0 %438
      %440 = vrot.lane.b32.xlu0 %v407, 112
      %v441 = vpop.permute.xlu0 %440
      %v442 = vsel %vm363, %v439, %v441
      %v443 = vsel %vm363, %v441, %v439
      %vm444 = vcmask 588800
      %v446 = vsel %vm444, %v379, 0
      %448 = vmatprep.subr.mxu0 %v412
      %449 = vmatpush1.msra.mxu0 %v413
      %450 = vmatprep.subr.mxu0 %v418
      %451 = vmatpush1.msra.mxu0 %v419
      %452 = vmatprep.subr.mxu0 %v424
      %453 = vmatpush1.msra.mxu0 %v425
      %454 = vmatprep.subr.mxu0 %v393
      %455 = vmatpush1.msra.mxu0 %v392
      %456 = vmatprep.subr.mxu0 %v275
      %457 = vmatpush1.msra.mxu0 %v274
      %458 = vmatprep.subr.mxu0 %v407
      %459 = vmatpush1.msra.mxu0 %v406
      %460 = vmatprep.subr.mxu0 %v431
      %461 = vmatpush1.msra.mxu0 %v430
      %462 = vmatprep.subr.mxu0 %v437
      %463 = vmatpush1.msra.mxu0 %v436
      %464 = vmatprep.subr.mxu0 %v443
      %465 = vmatpush1.msra.mxu0 %v442
      %466 = vmatprep.subr.mxu0 0.0
      %467 = vmatpush1.msra.mxu0 0.0
      %468 = vmatprep.subr.mxu0 0.0
      %469 = vmatpush1.msra.mxu0 0.0
      %470 = vmatprep.subr.mxu0 0.0
      %471 = vmatpush1.msra.mxu0 0.0
      %472 = vmatprep.subr.mxu0 0.0
      %473 = vmatpush1.msra.mxu0 0.0
      %474 = vmatprep.subr.mxu0 0.0
      %475 = vmatpush1.msra.mxu0 0.0
      %476 = vmatprep.subr.mxu0 0.0
      %477 = vmatpush1.msra.mxu0 0.0
      %478 = vmatprep.subr.mxu0 0.0
      %479 = vmatpush1.msra.mxu0 0.0
      %480 = vmatprep.subr.mxu0 0.0
      %481 = vmatpush1.msra.mxu0 0.0
      %482 = vmatprep.subr.mxu0 0.0
      %483 = vmatpush1.msra.mxu0 0.0
      %484 = vmatprep.subr.mxu0 0.0
      %485 = vmatpush1.msra.mxu0 0.0
      %486 = vmatprep.subr.mxu0 0.0
      %487 = vmatpush1.msra.mxu0 0.0
      %488 = vmatprep.subr.mxu0 0.0
      %489 = vmatpush1.msra.mxu0 0.0
      %490 = vmatprep.subr.mxu0 0.0
      %491 = vmatpush1.msra.mxu0 0.0
      %492 = vmatprep.subr.mxu0 0.0
      %493 = vmatpush1.msra.mxu0 0.0
      %494 = vmatprep.subr.mxu0 0.0
      %495 = vmatpush1.msra.mxu0 0.0
      %496 = vmatprep.subr.mxu0 0.0
      %497 = vmatpush1.msra.mxu0 0.0
      %498 = vmatprep.subr.mxu0 0.0
      %499 = vmatpush1.msra.mxu0 0.0
      %500 = vmatprep.subr.mxu0 0.0
      %501 = vmatpush1.msra.mxu0 0.0
      %502 = vmatprep.subr.mxu0 0.0
      %503 = vmatpush1.msra.mxu0 0.0
      %504 = vmatprep.subr.mxu0 0.0
      %505 = vmatpush1.msra.mxu0 0.0
      %506 = vmatprep.subr.mxu0 0.0
      %507 = vmatpush1.msra.mxu0 0.0
      %508 = vmatprep.subr.mxu0 0.0
      %509 = vmatpush1.msra.mxu0 0.0
      %510 = vmatprep.subr.mxu0 0.0
      %511 = vmatpush1.msra.mxu0 0.0
      %512 = vmatprep.mubr.f32.mxu0 0.0
      %513 = vmatmul.mubr.f32.gmra.mrb[0].mxu0 %v446
      %v514 = vpop.f32.mrb[0].mxu0
      %v515 = vadd.f32 0.0, %v514
      %v516 = vpop.f32.mrb[0].mxu0
      %v517 = vadd.f32 0.0, %v516
      %518 = vdwg.mxu0
      %v520 = vsel %vm444, %v307, 0
      %522 = vmatprep.subr.mxu0 %v345
      %523 = vmatpush1.msra.mxu0 %v346
      %524 = vmatprep.subr.mxu0 %v351
      %525 = vmatpush1.msra.mxu0 %v352
      %526 = vmatprep.subr.mxu0 %v357
      %527 = vmatpush1.msra.mxu0 %v358
      %528 = vmatprep.subr.mxu0 %v323
      %529 = vmatpush1.msra.mxu0 %v322
      %530 = vmatprep.subr.mxu0 %v273
      %531 = vmatpush1.msra.mxu0 %v272
      %532 = vmatprep.subr.mxu0 %v339
      %533 = vmatpush1.msra.mxu0 %v338
      %534 = vmatprep.subr.mxu0 %v365
      %535 = vmatpush1.msra.mxu0 %v364
      %536 = vmatprep.subr.mxu0 %v371
      %537 = vmatpush1.msra.mxu0 %v370
      %538 = vmatprep.subr.mxu0 %v377
      %539 = vmatpush1.msra.mxu0 %v376
      %540 = vmatprep.subr.mxu0 0.0
      %541 = vmatpush1.msra.mxu0 0.0
      %542 = vmatprep.subr.mxu0 0.0
      %543 = vmatpush1.msra.mxu0 0.0
      %544 = vmatprep.subr.mxu0 0.0
      %545 = vmatpush1.msra.mxu0 0.0
      %546 = vmatprep.subr.mxu0 0.0
      %547 = vmatpush1.msra.mxu0 0.0
      %548 = vmatprep.subr.mxu0 0.0
      %549 = vmatpush1.msra.mxu0 0.0
      %550 = vmatprep.subr.mxu0 0.0
      %551 = vmatpush1.msra.mxu0 0.0
      %552 = vmatprep.subr.mxu0 0.0
      %553 = vmatpush1.msra.mxu0 0.0
      %554 = vmatprep.subr.mxu0 0.0
      %555 = vmatpush1.msra.mxu0 0.0
      %556 = vmatprep.subr.mxu0 0.0
      %557 = vmatpush1.msra.mxu0 0.0
      %558 = vmatprep.subr.mxu0 0.0
      %559 = vmatpush1.msra.mxu0 0.0
      %560 = vmatprep.subr.mxu0 0.0
      %561 = vmatpush1.msra.mxu0 0.0
      %562 = vmatprep.subr.mxu0 0.0
      %563 = vmatpush1.msra.mxu0 0.0
      %564 = vmatprep.subr.mxu0 0.0
      %565 = vmatpush1.msra.mxu0 0.0
      %566 = vmatprep.subr.mxu0 0.0
      %567 = vmatpush1.msra.mxu0 0.0
      %568 = vmatprep.subr.mxu0 0.0
      %569 = vmatpush1.msra.mxu0 0.0
      %570 = vmatprep.subr.mxu0 0.0
      %571 = vmatpush1.msra.mxu0 0.0
      %572 = vmatprep.subr.mxu0 0.0
      %573 = vmatpush1.msra.mxu0 0.0
      %574 = vmatprep.subr.mxu0 0.0
      %575 = vmatpush1.msra.mxu0 0.0
      %576 = vmatprep.subr.mxu0 0.0
      %577 = vmatpush1.msra.mxu0 0.0
      %578 = vmatprep.subr.mxu0 0.0
      %579 = vmatpush1.msra.mxu0 0.0
      %580 = vmatprep.subr.mxu0 0.0
      %581 = vmatpush1.msra.mxu0 0.0
      %582 = vmatprep.subr.mxu0 0.0
      %583 = vmatpush1.msra.mxu0 0.0
      %584 = vmatprep.subr.mxu0 0.0
      %585 = vmatpush1.msra.mxu0 0.0
      %586 = vmatprep.mubr.f32.mxu0 0.0
      %587 = vmatmul.mubr.f32.gmra.mrb[0].mxu0 %v520
      %v588 = vpop.f32.mrb[0].mxu0
      %v589 = vadd.f32 %v515, %v588
      %v590 = vpop.f32.mrb[0].mxu0
      %v591 = vadd.f32 %v517, %v590
      %592 = vdwg.mxu0
      %v593 = vld [vmem:[%s3] sm:$0xff]
      %s594 = scalar_lea.vmem %s3, 8
      %v595 = vld [vmem:[%s594] sm:$0xff]
      %s596 = scalar_lea.vmem %s3, 16
      %v597 = vld [vmem:[%s596] sm:$0xff]
      %599 = vset.pattern.permute.xlu0 0
      %600 = vperm.xlu0 %599, %v593
      %v601 = vpop.permute.xlu0 %600
      %v603 = vadd.f32 %v589, %v601
      %v604 = vadd.f32 %v591, %v601
      %v605 = vadd.f32 %v603, %v604
      %606 = vadd.xlane.f32.xlu0 %v605
      %v607 = vpop.xlane.xlu0 %606
      %v608 = vrot.slane %v607, 4
      %v609 = vadd.f32 %v607, %v608
      %v610 = vrot.slane %v609, 2
      %v611 = vadd.f32 %v609, %v610
      %v612 = vrot.slane %v611, 1
      %v613 = vadd.f32 %v611, %v612
      %s614 = vtos %v613
      %v615 = vrcp.pop 2048.0
      %s616 = vtos %v615
      %s617 = smul.f32 %s614, %s616
      %v618 = vmul.f32 %v603, %v603
      %v619 = vmul.f32 %v604, %v604
      %v620 = vadd.f32 %v618, %v619
      %621 = vadd.xlane.f32.xlu0 %v620
      %v622 = vpop.xlane.xlu0 %621
      %v623 = vrot.slane %v622, 4
      %v624 = vadd.f32 %v622, %v623
      %v625 = vrot.slane %v624, 2
      %v626 = vadd.f32 %v624, %v625
      %v627 = vrot.slane %v626, 1
      %v628 = vadd.f32 %v626, %v627
      %s629 = vtos %v628
      %v630 = vrcp.pop 2048.0
      %s631 = vtos %v630
      %s632 = smul.f32 %s629, %s631
      %s633 = smul.f32 %s617, %s617
      %s634 = ssub.f32 %s632, %s633
      %v635 = vstv %s617
      %v636 = vsub.f32 %v603, %v635
      %v637 = vsub.f32 %v604, %v635
      %s638 = sadd.f32 %s634, 1e-05
      %v639 = vstv %s638
      %v640 = vrsqrt.pop %v639
      %s641 = vtos %v640
      %v642 = vstv %s641
      %v643 = vmul.f32 %v636, %v642
      %v644 = vmul.f32 %v637, %v642
      %646 = vset.pattern.permute.xlu0 0
      %647 = vperm.xlu0 %646, %v595
      %v648 = vpop.permute.xlu0 %647
      %v650 = vmul.f32 %v643, %v648
      %v651 = vmul.f32 %v644, %v648
      %653 = vset.pattern.permute.xlu0 0
      %654 = vperm.xlu0 %653, %v597
      %v655 = vpop.permute.xlu0 %654
      %v657 = vadd.f32 %v650, %v655
      %v658 = vadd.f32 %v651, %v655
      %v659 = vmul.f32 %v657, 0.5
      %v660 = vmul.f32 %v658, 0.5
      %v661 = vmul.f32 %v657, 0.044715
      %v662 = vmul.f32 %v658, 0.044715
      %v663 = vmul.f32 %v661, %v657
      %v664 = vmul.f32 %v662, %v658
      %v665 = vmul.f32 %v663, %v657
      %v666 = vmul.f32 %v664, %v658
      %v667 = vadd.f32 %v657, %v665
      %v668 = vadd.f32 %v658, %v666
      %v669 = vmul.f32 %v667, 0.7978846
      %v670 = vmul.f32 %v668, 0.7978846
      %v671 = vtanh.pop %v669
      %v672 = vtanh.pop %v670
      %v673 = vadd.f32 %v671, 1.0
      %v674 = vadd.f32 %v672, 1.0
      %v675 = vmul.f32 %v659, %v673
      %v676 = vmul.f32 %v660, %v674
      %s677 = scalar_lea.vmem %s2, 16
      %v678 = vld [vmem:[%s677] sm:$0xff]
      %679 = vrot.lane.b32.xlu0 %v675, 113
      %v680 = vpop.permute.xlu0 %679
      %681 = vrot.lane.b32.xlu0 %v676, 113
      %v682 = vpop.permute.xlu0 %681
      %v683 = vsel %vm312, %v680, %v682
      %v684 = vsel %vm312, %v682, %v680
      %685 = vrot.lane.b32.xlu0 %v675, 1
      %v686 = vpop.permute.xlu0 %685
      %687 = vrot.lane.b32.xlu0 %v676, 1
      %v688 = vpop.permute.xlu0 %687
      %v689 = vsel %vm319, %v686, %v688
      %v690 = vsel %vm319, %v688, %v686
      %v691 = vsel %vm303, %v683, %v690
      %v692 = vsel %vm304, %v684, %v689
      %693 = vrot.lane.b32.xlu0 %v675, 15
      %v694 = vpop.permute.xlu0 %693
      %695 = vrot.lane.b32.xlu0 %v676, 15
      %v696 = vpop.permute.xlu0 %695
      %v697 = vsel %vm328, %v694, %v696
      %v698 = vsel %vm328, %v696, %v694
      %699 = vrot.lane.b32.xlu0 %v675, 127
      %v700 = vpop.permute.xlu0 %699
      %701 = vrot.lane.b32.xlu0 %v676, 127
      %v702 = vpop.permute.xlu0 %701
      %v703 = vsel %vm335, %v700, %v702
      %v704 = vsel %vm335, %v702, %v700
      %v705 = vsel %vm305, %v698, %v703
      %v706 = vsel %vm306, %v697, %v704
      %707 = vrot.lane.b32.xlu0 %v691, 16
      %v708 = vpop.permute.xlu0 %707
      %709 = vrot.lane.b32.xlu0 %v692, 16
      %v710 = vpop.permute.xlu0 %709
      %v711 = vsel %vm344, %v708, %v710
      %v712 = vsel %vm344, %v710, %v708
      %713 = vrot.lane.b32.xlu0 %v675, 16
      %v714 = vpop.permute.xlu0 %713
      %715 = vrot.lane.b32.xlu0 %v676, 16
      %v716 = vpop.permute.xlu0 %715
      %v717 = vsel %vm344, %v714, %v716
      %v718 = vsel %vm344, %v716, %v714
      %719 = vrot.lane.b32.xlu0 %v705, 16
      %v720 = vpop.permute.xlu0 %719
      %721 = vrot.lane.b32.xlu0 %v706, 16
      %v722 = vpop.permute.xlu0 %721
      %v723 = vsel %vm344, %v720, %v722
      %v724 = vsel %vm344, %v722, %v720
      %725 = vrot.lane.b32.xlu0 %v691, 112
      %v726 = vpop.permute.xlu0 %725
      %727 = vrot.lane.b32.xlu0 %v692, 112
      %v728 = vpop.permute.xlu0 %727
      %v729 = vsel %vm363, %v726, %v728
      %v730 = vsel %vm363, %v728, %v726
      %731 = vrot.lane.b32.xlu0 %v675, 112
      %v732 = vpop.permute.xlu0 %731
      %733 = vrot.lane.b32.xlu0 %v676, 112
      %v734 = vpop.permute.xlu0 %733
      %v735 = vsel %vm363, %v732, %v734
      %v736 = vsel %vm363, %v734, %v732
      %737 = vrot.lane.b32.xlu0 %v705, 112
      %v738 = vpop.permute.xlu0 %737
      %739 = vrot.lane.b32.xlu0 %v706, 112
      %v740 = vpop.permute.xlu0 %739
      %v741 = vsel %vm363, %v738, %v740
      %v742 = vsel %vm363, %v740, %v738
      %s743 = scalar_lea.vmem %s3, 24
      %v744 = vld [vmem:[%s743] sm:$0xff]
      %s745 = scalar_lea.vmem %s3, 32
      %v746 = vld [vmem:[%s745] sm:$0xff]
      %s747 = scalar_lea.vmem %s3, 40
      %v748 = vld [vmem:[%s747] sm:$0xff]
      %750 = vset.pattern.permute.xlu0 0
      %751 = vperm.xlu0 %750, %v744
      %v752 = vpop.permute.xlu0 %751
      %v755 = vsel %vm444, %v678, 0
      %757 = vmatprep.subr.mxu0 %v711
      %758 = vmatpush1.msra.mxu0 %v712
      %759 = vmatprep.subr.mxu0 %v717
      %760 = vmatpush1.msra.mxu0 %v718
      %761 = vmatprep.subr.mxu0 %v723
      %762 = vmatpush1.msra.mxu0 %v724
      %763 = vmatprep.subr.mxu0 %v692
      %764 = vmatpush1.msra.mxu0 %v691
      %765 = vmatprep.subr.mxu0 %v676
      %766 = vmatpush1.msra.mxu0 %v675
      %767 = vmatprep.subr.mxu0 %v706
      %768 = vmatpush1.msra.mxu0 %v705
      %769 = vmatprep.subr.mxu0 %v730
      %770 = vmatpush1.msra.mxu0 %v729
      %771 = vmatprep.subr.mxu0 %v736
      %772 = vmatpush1.msra.mxu0 %v735
      %773 = vmatprep.subr.mxu0 %v742
      %774 = vmatpush1.msra.mxu0 %v741
      %775 = vmatprep.subr.mxu0 0.0
      %776 = vmatpush1.msra.mxu0 0.0
      %777 = vmatprep.subr.mxu0 0.0
      %778 = vmatpush1.msra.mxu0 0.0
      %779 = vmatprep.subr.mxu0 0.0
      %780 = vmatpush1.msra.mxu0 0.0
      %781 = vmatprep.subr.mxu0 0.0
      %782 = vmatpush1.msra.mxu0 0.0
      %783 = vmatprep.subr.mxu0 0.0
      %784 = vmatpush1.msra.mxu0 0.0
      %785 = vmatprep.subr.mxu0 0.0
      %786 = vmatpush1.msra.mxu0 0.0
      %787 = vmatprep.subr.mxu0 0.0
      %788 = vmatpush1.msra.mxu0 0.0
      %789 = vmatprep.subr.mxu0 0.0
      %790 = vmatpush1.msra.mxu0 0.0
      %791 = vmatprep.subr.mxu0 0.0
      %792 = vmatpush1.msra.mxu0 0.0
      %793 = vmatprep.subr.mxu0 0.0
      %794 = vmatpush1.msra.mxu0 0.0
      %795 = vmatprep.subr.mxu0 0.0
      %796 = vmatpush1.msra.mxu0 0.0
      %797 = vmatprep.subr.mxu0 0.0
      %798 = vmatpush1.msra.mxu0 0.0
      %799 = vmatprep.subr.mxu0 0.0
      %800 = vmatpush1.msra.mxu0 0.0
      %801 = vmatprep.subr.mxu0 0.0
      %802 = vmatpush1.msra.mxu0 0.0
      %803 = vmatprep.subr.mxu0 0.0
      %804 = vmatpush1.msra.mxu0 0.0
      %805 = vmatprep.subr.mxu0 0.0
      %806 = vmatpush1.msra.mxu0 0.0
      %807 = vmatprep.subr.mxu0 0.0
      %808 = vmatpush1.msra.mxu0 0.0
      %809 = vmatprep.subr.mxu0 0.0
      %810 = vmatpush1.msra.mxu0 0.0
      %811 = vmatprep.subr.mxu0 0.0
      %812 = vmatpush1.msra.mxu0 0.0
      %813 = vmatprep.subr.mxu0 0.0
      %814 = vmatpush1.msra.mxu0 0.0
      %815 = vmatprep.subr.mxu0 0.0
      %816 = vmatpush1.msra.mxu0 0.0
      %817 = vmatprep.subr.mxu0 0.0
      %818 = vmatpush1.msra.mxu0 0.0
      %819 = vmatprep.subr.mxu0 0.0
      %820 = vmatpush1.msra.mxu0 0.0
      %821 = vmatprep.mubr.f32.mxu0 0.0
      %822 = vmatmul.mubr.f32.gmra.mrb[0].mxu0 %v755
      %v823 = vpop.f32.mrb[0].mxu0
      %v824 = vadd.f32 %v752, %v823
      %v825 = vpop.f32.mrb[0].mxu0
      %v826 = vadd.f32 %v752, %v825
      %827 = vdwg.mxu0
      %v828 = vadd.f32 %v824, %v826
      %829 = vadd.xlane.f32.xlu0 %v828
      %v830 = vpop.xlane.xlu0 %829
      %v831 = vrot.slane %v830, 4
      %v832 = vadd.f32 %v830, %v831
      %v833 = vrot.slane %v832, 2
      %v834 = vadd.f32 %v832, %v833
      %v835 = vrot.slane %v834, 1
      %v836 = vadd.f32 %v834, %v835
      %s837 = vtos %v836
      %v838 = vrcp.pop 2048.0
      %s839 = vtos %v838
      %s840 = smul.f32 %s837, %s839
      %v841 = vmul.f32 %v824, %v824
      %v842 = vmul.f32 %v826, %v826
      %v843 = vadd.f32 %v841, %v842
      %844 = vadd.xlane.f32.xlu0 %v843
      %v845 = vpop.xlane.xlu0 %844
      %v846 = vrot.slane %v845, 4
      %v847 = vadd.f32 %v845, %v846
      %v848 = vrot.slane %v847, 2
      %v849 = vadd.f32 %v847, %v848
      %v850 = vrot.slane %v849, 1
      %v851 = vadd.f32 %v849, %v850
      %s852 = vtos %v851
      %v853 = vrcp.pop 2048.0
      %s854 = vtos %v853
      %s855 = smul.f32 %s852, %s854
      %s856 = smul.f32 %s840, %s840
      %s857 = ssub.f32 %s855, %s856
      %v858 = vstv %s840
      %v859 = vsub.f32 %v824, %v858
      %v860 = vsub.f32 %v826, %v858
      %s861 = sadd.f32 %s857, 1e-05
      %v862 = vstv %s861
      %v863 = vrsqrt.pop %v862
      %s864 = vtos %v863
      %v865 = vstv %s864
      %v866 = vmul.f32 %v859, %v865
      %v867 = vmul.f32 %v860, %v865
      %869 = vset.pattern.permute.xlu0 0
      %870 = vperm.xlu0 %869, %v746
      %v871 = vpop.permute.xlu0 %870
      %v873 = vmul.f32 %v866, %v871
      %v874 = vmul.f32 %v867, %v871
      %876 = vset.pattern.permute.xlu0 0
      %877 = vperm.xlu0 %876, %v748
      %v878 = vpop.permute.xlu0 %877
      %v880 = vadd.f32 %v873, %v878
      %v881 = vadd.f32 %v874, %v878
      %v882 = vmul.f32 %v880, 0.5
      %v883 = vmul.f32 %v881, 0.5
      %v884 = vmul.f32 %v880, 0.044715
      %v885 = vmul.f32 %v881, 0.044715
      %v886 = vmul.f32 %v884, %v880
      %v887 = vmul.f32 %v885, %v881
      %v888 = vmul.f32 %v886, %v880
      %v889 = vmul.f32 %v887, %v881
      %v890 = vadd.f32 %v880, %v888
      %v891 = vadd.f32 %v881, %v889
      %v892 = vmul.f32 %v890, 0.7978846
      %v893 = vmul.f32 %v891, 0.7978846
      %v894 = vtanh.pop %v892
      %v895 = vtanh.pop %v893
      %v896 = vadd.f32 %v894, 1.0
      %v897 = vadd.f32 %v895, 1.0
      %v898 = vmul.f32 %v882, %v896
      %v899 = vmul.f32 %v883, %v897
      %v900 = vld [vmem:[%s4] sm:$0xff]
      %vm901 = vcmask 64512
      %v903 = vsel %vm901, %v900, 0
      %905 = vmatprep.subr.mxu0 %v275
      %906 = vmatpush1.msra.mxu0 %v274
      %907 = vmatprep.subr.mxu0 0.0
      %908 = vmatpush1.msra.mxu0 0.0
      %909 = vmatprep.subr.mxu0 0.0
      %910 = vmatpush1.msra.mxu0 0.0
      %911 = vmatprep.subr.mxu0 0.0
      %912 = vmatpush1.msra.mxu0 0.0
      %913 = vmatprep.subr.mxu0 0.0
      %914 = vmatpush1.msra.mxu0 0.0
      %915 = vmatprep.subr.mxu0 0.0
      %916 = vmatpush1.msra.mxu0 0.0
      %917 = vmatprep.subr.mxu0 0.0
      %918 = vmatpush1.msra.mxu0 0.0
      %919 = vmatprep.subr.mxu0 0.0
      %920 = vmatpush1.msra.mxu0 0.0
      %921 = vmatprep.subr.mxu0 0.0
      %922 = vmatpush1.msra.mxu0 0.0
      %923 = vmatprep.subr.mxu0 0.0
      %924 = vmatpush1.msra.mxu0 0.0
      %925 = vmatprep.subr.mxu0 0.0
      %926 = vmatpush1.msra.mxu0 0.0
      %927 = vmatprep.subr.mxu0 0.0
      %928 = vmatpush1.msra.mxu0 0.0
      %929 = vmatprep.subr.mxu0 0.0
      %930 = vmatpush1.msra.mxu0 0.0
      %931 = vmatprep.subr.mxu0 0.0
      %932 = vmatpush1.msra.mxu0 0.0
      %933 = vmatprep.subr.mxu0 0.0
      %934 = vmatpush1.msra.mxu0 0.0
      %935 = vmatprep.subr.mxu0 0.0
      %936 = vmatpush1.msra.mxu0 0.0
      %937 = vmatprep.subr.mxu0 0.0
      %938 = vmatpush1.msra.mxu0 0.0
      %939 = vmatprep.subr.mxu0 0.0
      %940 = vmatpush1.msra.mxu0 0.0
      %941 = vmatprep.subr.mxu0 0.0
      %942 = vmatpush1.msra.mxu0 0.0
      %943 = vmatprep.subr.mxu0 0.0
      %944 = vmatpush1.msra.mxu0 0.0
      %945 = vmatprep.subr.mxu0 0.0
      %946 = vmatpush1.msra.mxu0 0.0
      %947 = vmatprep.subr.mxu0 0.0
      %948 = vmatpush1.msra.mxu0 0.0
      %949 = vmatprep.subr.mxu0 0.0
      %950 = vmatpush1.msra.mxu0 0.0
      %951 = vmatprep.subr.mxu0 0.0
      %952 = vmatpush1.msra.mxu0 0.0
      %953 = vmatprep.subr.mxu0 0.0
      %954 = vmatpush1.msra.mxu0 0.0
      %955 = vmatprep.subr.mxu0 0.0
      %956 = vmatpush1.msra.mxu0 0.0
      %957 = vmatprep.subr.mxu0 0.0
      %958 = vmatpush1.msra.mxu0 0.0
      %959 = vmatprep.subr.mxu0 0.0
      %960 = vmatpush1.msra.mxu0 0.0
      %961 = vmatprep.subr.mxu0 0.0
      %962 = vmatpush1.msra.mxu0 0.0
      %963 = vmatprep.subr.mxu0 0.0
      %964 = vmatpush1.msra.mxu0 0.0
      %965 = vmatprep.subr.mxu0 0.0
      %966 = vmatpush1.msra.mxu0 0.0
      %967 = vmatprep.subr.mxu0 0.0
      %968 = vmatpush1.msra.mxu0 0.0
      %969 = vmatprep.mubr.f32.mxu0 0.0
      %970 = vmatmul.mubr.f32.gmra.mrb[0].mxu0 %v903
      %v971 = vpop.f32.mrb[0].mxu0
      %v972 = vadd.f32 0.0, %v971
      %v973 = vpop.f32.mrb[0].mxu0
      %v974 = vadd.f32 0.0, %v973
      %975 = vdwg.mxu0
      %v976 = vadd.f32 %v898, %v972
      %v977 = vadd.f32 %v899, %v974
      %v978 = vld [vmem:[%s5] sm:$0xff]
      %980 = vset.pattern.permute.xlu0 0
      %981 = vperm.xlu0 %980, %v978
      %v982 = vpop.permute.xlu0 %981
      %v984 = vadd.f32 %v976, %v982
      %v985 = vadd.f32 %v977, %v982
      %s986 = scalar_lea.vmem %s2, 24
      %v987 = vld [vmem:[%s986] sm:$0xff]
      %988 = vrot.lane.b32.xlu0 %v984, 113
      %v989 = vpop.permute.xlu0 %988
      %990 = vrot.lane.b32.xlu0 %v985, 113
      %v991 = vpop.permute.xlu0 %990
      %v992 = vsel %vm312, %v989, %v991
      %v993 = vsel %vm312, %v991, %v989
      %994 = vrot.lane.b32.xlu0 %v984, 1
      %v995 = vpop.permute.xlu0 %994
      %996 = vrot.lane.b32.xlu0 %v985, 1
      %v997 = vpop.permute.xlu0 %996
      %v998 = vsel %vm319, %v995, %v997
      %v999 = vsel %vm319, %v997, %v995
      %v1000 = vsel %vm303, %v992, %v999
      %v1001 = vsel %vm304, %v993, %v998
      %1002 = vrot.lane.b32.xlu0 %v984, 15
      %v1003 = vpop.permute.xlu0 %1002
      %1004 = vrot.lane.b32.xlu0 %v985, 15
      %v1005 = vpop.permute.xlu0 %1004
      %v1006 = vsel %vm328, %v1003, %v1005
      %v1007 = vsel %vm328, %v1005, %v1003
      %1008 = vrot.lane.b32.xlu0 %v984, 127
      %v1009 = vpop.permute.xlu0 %1008
      %1010 = vrot.lane.b32.xlu0 %v985, 127
      %v1011 = vpop.permute.xlu0 %1010
      %v1012 = vsel %vm335, %v1009, %v1011
      %v1013 = vsel %vm335, %v1011, %v1009
      %v1014 = vsel %vm305, %v1007, %v1012
      %v1015 = vsel %vm306, %v1006, %v1013
      %1016 = vrot.lane.b32.xlu0 %v1000, 16
      %v1017 = vpop.permute.xlu0 %1016
      %1018 = vrot.lane.b32.xlu0 %v1001, 16
      %v1019 = vpop.permute.xlu0 %1018
      %v1020 = vsel %vm344, %v1017, %v1019
      %v1021 = vsel %vm344, %v1019, %v1017
      %1022 = vrot.lane.b32.xlu0 %v984, 16
      %v1023 = vpop.permute.xlu0 %1022
      %1024 = vrot.lane.b32.xlu0 %v985, 16
      %v1025 = vpop.permute.xlu0 %1024
      %v1026 = vsel %vm344, %v1023, %v1025
      %v1027 = vsel %vm344, %v1025, %v1023
      %1028 = vrot.lane.b32.xlu0 %v1014, 16
      %v1029 = vpop.permute.xlu0 %1028
      %1030 = vrot.lane.b32.xlu0 %v1015, 16
      %v1031 = vpop.permute.xlu0 %1030
      %v1032 = vsel %vm344, %v1029, %v1031
      %v1033 = vsel %vm344, %v1031, %v1029
      %1034 = vrot.lane.b32.xlu0 %v1000, 112
      %v1035 = vpop.permute.xlu0 %1034
      %1036 = vrot.lane.b32.xlu0 %v1001, 112
      %v1037 = vpop.permute.xlu0 %1036
      %v1038 = vsel %vm363, %v1035, %v1037
      %v1039 = vsel %vm363, %v1037, %v1035
      %1040 = vrot.lane.b32.xlu0 %v984, 112
      %v1041 = vpop.permute.xlu0 %1040
      %1042 = vrot.lane.b32.xlu0 %v985, 112
      %v1043 = vpop.permute.xlu0 %1042
      %v1044 = vsel %vm363, %v1041, %v1043
      %v1045 = vsel %vm363, %v1043, %v1041
      %1046 = vrot.lane.b32.xlu0 %v1014, 112
      %v1047 = vpop.permute.xlu0 %1046
      %1048 = vrot.lane.b32.xlu0 %v1015, 112
      %v1049 = vpop.permute.xlu0 %1048
      %v1050 = vsel %vm363, %v1047, %v1049
      %v1051 = vsel %vm363, %v1049, %v1047
      %s1052 = scalar_lea.vmem %s3, 48
      %v1053 = vld [vmem:[%s1052] sm:$0xff]
      %s1054 = scalar_lea.vmem %s3, 56
      %v1055 = vld [vmem:[%s1054] sm:$0xff]
      %s1056 = scalar_lea.vmem %s3, 64
      %v1057 = vld [vmem:[%s1056] sm:$0xff]
      %1059 = vset.pattern.permute.xlu0 0
      %1060 = vperm.xlu0 %1059, %v1053
      %v1061 = vpop.permute.xlu0 %1060
      %v1064 = vsel %vm444, %v987, 0
      %1066 = vmatprep.subr.mxu0 %v1020
      %1067 = vmatpush1.msra.mxu0 %v1021
      %1068 = vmatprep.subr.mxu0 %v1026
      %1069 = vmatpush1.msra.mxu0 %v1027
      %1070 = vmatprep.subr.mxu0 %v1032
      %1071 = vmatpush1.msra.mxu0 %v1033
      %1072 = vmatprep.subr.mxu0 %v1001
      %1073 = vmatpush1.msra.mxu0 %v1000
      %1074 = vmatprep.subr.mxu0 %v985
      %1075 = vmatpush1.msra.mxu0 %v984
      %1076 = vmatprep.subr.mxu0 %v1015
      %1077 = vmatpush1.msra.mxu0 %v1014
      %1078 = vmatprep.subr.mxu0 %v1039
      %1079 = vmatpush1.msra.mxu0 %v1038
      %1080 = vmatprep.subr.mxu0 %v1045
      %1081 = vmatpush1.msra.mxu0 %v1044
      %1082 = vmatprep.subr.mxu0 %v1051
      %1083 = vmatpush1.msra.mxu0 %v1050
      %1084 = vmatprep.subr.mxu0 0.0
      %1085 = vmatpush1.msra.mxu0 0.0
      %1086 = vmatprep.subr.mxu0 0.0
      %1087 = vmatpush1.msra.mxu0 0.0
      %1088 = vmatprep.subr.mxu0 0.0
      %1089 = vmatpush1.msra.mxu0 0.0
      %1090 = vmatprep.subr.mxu0 0.0
      %1091 = vmatpush1.msra.mxu0 0.0
      %1092 = vmatprep.subr.mxu0 0.0
      %1093 = vmatpush1.msra.mxu0 0.0
      %1094 = vmatprep.subr.mxu0 0.0
      %1095 = vmatpush1.msra.mxu0 0.0
      %1096 = vmatprep.subr.mxu0 0.0
      %1097 = vmatpush1.msra.mxu0 0.0
      %1098 = vmatprep.subr.mxu0 0.0
      %1099 = vmatpush1.msra.mxu0 0.0
      %1100 = vmatprep.subr.mxu0 0.0
      %1101 = vmatpush1.msra.mxu0 0.0
      %1102 = vmatprep.subr.mxu0 0.0
      %1103 = vmatpush1.msra.mxu0 0.0
      %1104 = vmatprep.subr.mxu0 0.0
      %1105 = vmatpush1.msra.mxu0 0.0
      %1106 = vmatprep.subr.mxu0 0.0
      %1107 = vmatpush1.msra.mxu0 0.0
      %1108 = vmatprep.subr.mxu0 0.0
      %1109 = vmatpush1.msra.mxu0 0.0
      %1110 = vmatprep.subr.mxu0 0.0
      %1111 = vmatpush1.msra.mxu0 0.0
      %1112 = vmatprep.subr.mxu0 0.0
      %1113 = vmatpush1.msra.mxu0 0.0
      %1114 = vmatprep.subr.mxu0 0.0
      %1115 = vmatpush1.msra.mxu0 0.0
      %1116 = vmatprep.subr.mxu0 0.0
      %1117 = vmatpush1.msra.mxu0 0.0
      %1118 = vmatprep.subr.mxu0 0.0
      %1119 = vmatpush1.msra.mxu0 0.0
      %1120 = vmatprep.subr.mxu0 0.0
      %1121 = vmatpush1.msra.mxu0 0.0
      %1122 = vmatprep.subr.mxu0 0.0
      %1123 = vmatpush1.msra.mxu0 0.0
      %1124 = vmatprep.subr.mxu0 0.0
      %1125 = vmatpush1.msra.mxu0 0.0
      %1126 = vmatprep.subr.mxu0 0.0
      %1127 = vmatpush1.msra.mxu0 0.0
      %1128 = vmatprep.subr.mxu0 0.0
      %1129 = vmatpush1.msra.mxu0 0.0
      %1130 = vmatprep.mubr.f32.mxu0 0.0
      %1131 = vmatmul.mubr.f32.gmra.mrb[0].mxu0 %v1064
      %v1132 = vpop.f32.mrb[0].mxu0
      %v1133 = vadd.f32 %v1061, %v1132
      %v1134 = vpop.f32.mrb[0].mxu0
      %v1135 = vadd.f32 %v1061, %v1134
      %1136 = vdwg.mxu0
      %v1137 = vadd.f32 %v1133, %v1135
      %1138 = vadd.xlane.f32.xlu0 %v1137
      %v1139 = vpop.xlane.xlu0 %1138
      %v1140 = vrot.slane %v1139, 4
      %v1141 = vadd.f32 %v1139, %v1140
      %v1142 = vrot.slane %v1141, 2
      %v1143 = vadd.f32 %v1141, %v1142
      %v1144 = vrot.slane %v1143, 1
      %v1145 = vadd.f32 %v1143, %v1144
      %s1146 = vtos %v1145
      %v1147 = vrcp.pop 2048.0
      %s1148 = vtos %v1147
      %s1149 = smul.f32 %s1146, %s1148
      %v1150 = vmul.f32 %v1133, %v1133
      %v1151 = vmul.f32 %v1135, %v1135
      %v1152 = vadd.f32 %v1150, %v1151
      %1153 = vadd.xlane.f32.xlu0 %v1152
      %v1154 = vpop.xlane.xlu0 %1153
      %v1155 = vrot.slane %v1154, 4
      %v1156 = vadd.f32 %v1154, %v1155
      %v1157 = vrot.slane %v1156, 2
      %v1158 = vadd.f32 %v1156, %v1157
      %v1159 = vrot.slane %v1158, 1
      %v1160 = vadd.f32 %v1158, %v1159
      %s1161 = vtos %v1160
      %v1162 = vrcp.pop 2048.0
      %s1163 = vtos %v1162
      %s1164 = smul.f32 %s1161, %s1163
      %s1165 = smul.f32 %s1149, %s1149
      %s1166 = ssub.f32 %s1164, %s1165
      %v1167 = vstv %s1149
      %v1168 = vsub.f32 %v1133, %v1167
      %v1169 = vsub.f32 %v1135, %v1167
      %s1170 = sadd.f32 %s1166, 1e-05
      %v1171 = vstv %s1170
      %v1172 = vrsqrt.pop %v1171
      %s1173 = vtos %v1172
      %v1174 = vstv %s1173
      %v1175 = vmul.f32 %v1168, %v1174
      %v1176 = vmul.f32 %v1169, %v1174
      %1178 = vset.pattern.permute.xlu0 0
      %1179 = vperm.xlu0 %1178, %v1055
      %v1180 = vpop.permute.xlu0 %1179
      %v1182 = vmul.f32 %v1175, %v1180
      %v1183 = vmul.f32 %v1176, %v1180
      %1185 = vset.pattern.permute.xlu0 0
      %1186 = vperm.xlu0 %1185, %v1057
      %v1187 = vpop.permute.xlu0 %1186
      %v1189 = vadd.f32 %v1182, %v1187
      %v1190 = vadd.f32 %v1183, %v1187
      %v1191 = vmul.f32 %v1189, 0.5
      %v1192 = vmul.f32 %v1190, 0.5
      %v1193 = vmul.f32 %v1189, 0.044715
      %v1194 = vmul.f32 %v1190, 0.044715
      %v1195 = vmul.f32 %v1193, %v1189
      %v1196 = vmul.f32 %v1194, %v1190
      %v1197 = vmul.f32 %v1195, %v1189
      %v1198 = vmul.f32 %v1196, %v1190
      %v1199 = vadd.f32 %v1189, %v1197
      %v1200 = vadd.f32 %v1190, %v1198
      %v1201 = vmul.f32 %v1199, 0.7978846
      %v1202 = vmul.f32 %v1200, 0.7978846
      %v1203 = vtanh.pop %v1201
      %v1204 = vtanh.pop %v1202
      %v1205 = vadd.f32 %v1203, 1.0
      %v1206 = vadd.f32 %v1204, 1.0
      %v1207 = vmul.f32 %v1191, %v1205
      %v1208 = vmul.f32 %v1192, %v1206
      %s1209 = scalar_lea.vmem %s2, 32
      %v1210 = vld [vmem:[%s1209] sm:$0xff]
      %1211 = vrot.lane.b32.xlu0 %v1207, 113
      %v1212 = vpop.permute.xlu0 %1211
      %1213 = vrot.lane.b32.xlu0 %v1208, 113
      %v1214 = vpop.permute.xlu0 %1213
      %v1215 = vsel %vm312, %v1212, %v1214
      %v1216 = vsel %vm312, %v1214, %v1212
      %1217 = vrot.lane.b32.xlu0 %v1207, 1
      %v1218 = vpop.permute.xlu0 %1217
      %1219 = vrot.lane.b32.xlu0 %v1208, 1
      %v1220 = vpop.permute.xlu0 %1219
      %v1221 = vsel %vm319, %v1218, %v1220
      %v1222 = vsel %vm319, %v1220, %v1218
      %v1223 = vsel %vm303, %v1215, %v1222
      %v1224 = vsel %vm304, %v1216, %v1221
      %1225 = vrot.lane.b32.xlu0 %v1207, 15
      %v1226 = vpop.permute.xlu0 %1225
      %1227 = vrot.lane.b32.xlu0 %v1208, 15
      %v1228 = vpop.permute.xlu0 %1227
      %v1229 = vsel %vm328, %v1226, %v1228
      %v1230 = vsel %vm328, %v1228, %v1226
      %1231 = vrot.lane.b32.xlu0 %v1207, 127
      %v1232 = vpop.permute.xlu0 %1231
      %1233 = vrot.lane.b32.xlu0 %v1208, 127
      %v1234 = vpop.permute.xlu0 %1233
      %v1235 = vsel %vm335, %v1232, %v1234
      %v1236 = vsel %vm335, %v1234, %v1232
      %v1237 = vsel %vm305, %v1230, %v1235
      %v1238 = vsel %vm306, %v1229, %v1236
      %1239 = vrot.lane.b32.xlu0 %v1223, 16
      %v1240 = vpop.permute.xlu0 %1239
      %1241 = vrot.lane.b32.xlu0 %v1224, 16
      %v1242 = vpop.permute.xlu0 %1241
      %v1243 = vsel %vm344, %v1240, %v1242
      %v1244 = vsel %vm344, %v1242, %v1240
      %1245 = vrot.lane.b32.xlu0 %v1207, 16
      %v1246 = vpop.permute.xlu0 %1245
      %1247 = vrot.lane.b32.xlu0 %v1208, 16
      %v1248 = vpop.permute.xlu0 %1247
      %v1249 = vsel %vm344, %v1246, %v1248
      %v1250 = vsel %vm344, %v1248, %v1246
      %1251 = vrot.lane.b32.xlu0 %v1237, 16
      %v1252 = vpop.permute.xlu0 %1251
      %1253 = vrot.lane.b32.xlu0 %v1238, 16
      %v1254 = vpop.permute.xlu0 %1253
      %v1255 = vsel %vm344, %v1252, %v1254
      %v1256 = vsel %vm344, %v1254, %v1252
      %1257 = vrot.lane.b32.xlu0 %v1223, 112
      %v1258 = vpop.permute.xlu0 %1257
      %1259 = vrot.lane.b32.xlu0 %v1224, 112
      %v1260 = vpop.permute.xlu0 %1259
      %v1261 = vsel %vm363, %v1258, %v1260
      %v1262 = vsel %vm363, %v1260, %v1258
      %1263 = vrot.lane.b32.xlu0 %v1207, 112
      %v1264 = vpop.permute.xlu0 %1263
      %1265 = vrot.lane.b32.xlu0 %v1208, 112
      %v1266 = vpop.permute.xlu0 %1265
      %v1267 = vsel %vm363, %v1264, %v1266
      %v1268 = vsel %vm363, %v1266, %v1264
      %1269 = vrot.lane.b32.xlu0 %v1237, 112
      %v1270 = vpop.permute.xlu0 %1269
      %1271 = vrot.lane.b32.xlu0 %v1238, 112
      %v1272 = vpop.permute.xlu0 %1271
      %v1273 = vsel %vm363, %v1270, %v1272
      %v1274 = vsel %vm363, %v1272, %v1270
      %s1275 = scalar_lea.vmem %s3, 72
      %v1276 = vld [vmem:[%s1275] sm:$0xff]
      %s1277 = scalar_lea.vmem %s3, 80
      %v1278 = vld [vmem:[%s1277] sm:$0xff]
      %s1279 = scalar_lea.vmem %s3, 88
      %v1280 = vld [vmem:[%s1279] sm:$0xff]
      %1282 = vset.pattern.permute.xlu0 0
      %1283 = vperm.xlu0 %1282, %v1276
      %v1284 = vpop.permute.xlu0 %1283
      %v1287 = vsel %vm444, %v1210, 0
      %1289 = vmatprep.subr.mxu0 %v1243
      %1290 = vmatpush1.msra.mxu0 %v1244
      %1291 = vmatprep.subr.mxu0 %v1249
      %1292 = vmatpush1.msra.mxu0 %v1250
      %1293 = vmatprep.subr.mxu0 %v1255
      %1294 = vmatpush1.msra.mxu0 %v1256
      %1295 = vmatprep.subr.mxu0 %v1224
      %1296 = vmatpush1.msra.mxu0 %v1223
      %1297 = vmatprep.subr.mxu0 %v1208
      %1298 = vmatpush1.msra.mxu0 %v1207
      %1299 = vmatprep.subr.mxu0 %v1238
      %1300 = vmatpush1.msra.mxu0 %v1237
      %1301 = vmatprep.subr.mxu0 %v1262
      %1302 = vmatpush1.msra.mxu0 %v1261
      %1303 = vmatprep.subr.mxu0 %v1268
      %1304 = vmatpush1.msra.mxu0 %v1267
      %1305 = vmatprep.subr.mxu0 %v1274
      %1306 = vmatpush1.msra.mxu0 %v1273
      %1307 = vmatprep.subr.mxu0 0.0
      %1308 = vmatpush1.msra.mxu0 0.0
      %1309 = vmatprep.subr.mxu0 0.0
      %1310 = vmatpush1.msra.mxu0 0.0
      %1311 = vmatprep.subr.mxu0 0.0
      %1312 = vmatpush1.msra.mxu0 0.0
      %1313 = vmatprep.subr.mxu0 0.0
      %1314 = vmatpush1.msra.mxu0 0.0
      %1315 = vmatprep.subr.mxu0 0.0
      %1316 = vmatpush1.msra.mxu0 0.0
      %1317 = vmatprep.subr.mxu0 0.0
      %1318 = vmatpush1.msra.mxu0 0.0
      %1319 = vmatprep.subr.mxu0 0.0
      %1320 = vmatpush1.msra.mxu0 0.0
      %1321 = vmatprep.subr.mxu0 0.0
      %1322 = vmatpush1.msra.mxu0 0.0
      %1323 = vmatprep.subr.mxu0 0.0
      %1324 = vmatpush1.msra.mxu0 0.0
      %1325 = vmatprep.subr.mxu0 0.0
      %1326 = vmatpush1.msra.mxu0 0.0
      %1327 = vmatprep.subr.mxu0 0.0
      %1328 = vmatpush1.msra.mxu0 0.0
      %1329 = vmatprep.subr.mxu0 0.0
      %1330 = vmatpush1.msra.mxu0 0.0
      %1331 = vmatprep.subr.mxu0 0.0
      %1332 = vmatpush1.msra.mxu0 0.0
      %1333 = vmatprep.subr.mxu0 0.0
      %1334 = vmatpush1.msra.mxu0 0.0
      %1335 = vmatprep.subr.mxu0 0.0
      %1336 = vmatpush1.msra.mxu0 0.0
      %1337 = vmatprep.subr.mxu0 0.0
      %1338 = vmatpush1.msra.mxu0 0.0
      %1339 = vmatprep.subr.mxu0 0.0
      %1340 = vmatpush1.msra.mxu0 0.0
      %1341 = vmatprep.subr.mxu0 0.0
      %1342 = vmatpush1.msra.mxu0 0.0
      %1343 = vmatprep.subr.mxu0 0.0
      %1344 = vmatpush1.msra.mxu0 0.0
      %1345 = vmatprep.subr.mxu0 0.0
      %1346 = vmatpush1.msra.mxu0 0.0
      %1347 = vmatprep.subr.mxu0 0.0
      %1348 = vmatpush1.msra.mxu0 0.0
      %1349 = vmatprep.subr.mxu0 0.0
      %1350 = vmatpush1.msra.mxu0 0.0
      %1351 = vmatprep.subr.mxu0 0.0
      %1352 = vmatpush1.msra.mxu0 0.0
      %1353 = vmatprep.mubr.f32.mxu0 0.0
      %1354 = vmatmul.mubr.f32.gmra.mrb[0].mxu0 %v1287
      %v1355 = vpop.f32.mrb[0].mxu0
      %v1356 = vadd.f32 %v1284, %v1355
      %v1357 = vpop.f32.mrb[0].mxu0
      %v1358 = vadd.f32 %v1284, %v1357
      %1359 = vdwg.mxu0
      %v1360 = vadd.f32 %v1356, %v1358
      %1361 = vadd.xlane.f32.xlu0 %v1360
      %v1362 = vpop.xlane.xlu0 %1361
      %v1363 = vrot.slane %v1362, 4
      %v1364 = vadd.f32 %v1362, %v1363
      %v1365 = vrot.slane %v1364, 2
      %v1366 = vadd.f32 %v1364, %v1365
      %v1367 = vrot.slane %v1366, 1
      %v1368 = vadd.f32 %v1366, %v1367
      %s1369 = vtos %v1368
      %v1370 = vrcp.pop 2048.0
      %s1371 = vtos %v1370
      %s1372 = smul.f32 %s1369, %s1371
      %v1373 = vmul.f32 %v1356, %v1356
      %v1374 = vmul.f32 %v1358, %v1358
      %v1375 = vadd.f32 %v1373, %v1374
      %1376 = vadd.xlane.f32.xlu0 %v1375
      %v1377 = vpop.xlane.xlu0 %1376
      %v1378 = vrot.slane %v1377, 4
      %v1379 = vadd.f32 %v1377, %v1378
      %v1380 = vrot.slane %v1379, 2
      %v1381 = vadd.f32 %v1379, %v1380
      %v1382 = vrot.slane %v1381, 1
      %v1383 = vadd.f32 %v1381, %v1382
      %s1384 = vtos %v1383
      %v1385 = vrcp.pop 2048.0
      %s1386 = vtos %v1385
      %s1387 = smul.f32 %s1384, %s1386
      %s1388 = smul.f32 %s1372, %s1372
      %s1389 = ssub.f32 %s1387, %s1388
      %v1390 = vstv %s1372
      %v1391 = vsub.f32 %v1356, %v1390
      %v1392 = vsub.f32 %v1358, %v1390
      %s1393 = sadd.f32 %s1389, 1e-05
      %v1394 = vstv %s1393
      %v1395 = vrsqrt.pop %v1394
      %s1396 = vtos %v1395
      %v1397 = vstv %s1396
      %v1398 = vmul.f32 %v1391, %v1397
      %v1399 = vmul.f32 %v1392, %v1397
      %1401 = vset.pattern.permute.xlu0 0
      %1402 = vperm.xlu0 %1401, %v1278
      %v1403 = vpop.permute.xlu0 %1402
      %v1405 = vmul.f32 %v1398, %v1403
      %v1406 = vmul.f32 %v1399, %v1403
      %1408 = vset.pattern.permute.xlu0 0
      %1409 = vperm.xlu0 %1408, %v1280
      %v1410 = vpop.permute.xlu0 %1409
      %v1412 = vadd.f32 %v1405, %v1410
      %v1413 = vadd.f32 %v1406, %v1410
      %v1414 = vmul.f32 %v1412, 0.5
      %v1415 = vmul.f32 %v1413, 0.5
      %v1416 = vmul.f32 %v1412, 0.044715
      %v1417 = vmul.f32 %v1413, 0.044715
      %v1418 = vmul.f32 %v1416, %v1412
      %v1419 = vmul.f32 %v1417, %v1413
      %v1420 = vmul.f32 %v1418, %v1412
      %v1421 = vmul.f32 %v1419, %v1413
      %v1422 = vadd.f32 %v1412, %v1420
      %v1423 = vadd.f32 %v1413, %v1421
      %v1424 = vmul.f32 %v1422, 0.7978846
      %v1425 = vmul.f32 %v1423, 0.7978846
      %v1426 = vtanh.pop %v1424
      %v1427 = vtanh.pop %v1425
      %v1428 = vadd.f32 %v1426, 1.0
      %v1429 = vadd.f32 %v1427, 1.0
      %v1430 = vmul.f32 %v1414, %v1428
      %v1431 = vmul.f32 %v1415, %v1429
      %v1432 = vadd.f32 %v1430, %v984
      %v1433 = vadd.f32 %v1431, %v985
      %1434 = vst [vmem:[%s271] sm:$0xff] %v1432
      %1435 = vst [vmem:[%s271 + $0x8] sm:$0xff] %v1433
      %p1436 = scmp.lt.s32.totalorder %s17, 1
      %s1437 = scalar_select %p1436, %s17, 1
      %s1438 = smul.addr %s1437, 2
      %s1439 = smul.addr %s1438, 8
      %s1440 = scalar_lea.vmem %s6, %s1439
      // Predicated region
      $region45: #{up_forward.1} parent=43 // pred_check
        %p1441 = pneg %p171
      $region46: #{up_forward.1} parent=43 // pred_check_branch
        %1443 = sbr.rel (%p1441) target = $region48
      $region47: #{up_forward.1} parent=43 // pred_region
        _
      $region48: #{up_forward.1} parent=43 // pred_fallthru
        _
    $region44: #{up_forward.1} parent=5 // pred_fallthru
      _
    %p1444 = scmp.le.s32.totalorder 2, %s12
    // Predicated region
    $region49: #{up_forward.1} parent=5 // pred_check
      %p1445 = pneg %p1444
    $region50: #{up_forward.1} parent=5 // pred_check_branch
      %1447 = sbr.rel (%p1445) target = $region52
    $region51: #{up_forward.1} parent=5 // pred_region
      %s1448 = ssub.s32 %s12, 2
      // Predicated region
      $region53: #{up_forward.1} parent=51 // pred_check
        %p1449 = pneg %p177
      $region54: #{up_forward.1} parent=51 // pred_check_branch
        %1451 = sbr.rel (%p1449) target = $region56
      $region55: #{up_forward.1} parent=51 // pred_region
        %p1452 = scmp.lt.s32.totalorder %s18, 1
        %s1453 = scalar_select %p1452, %s18, 1
        %s1454 = smul.addr %s1453, 2
        %s1455 = smul.addr %s1454, 8
        %s1456 = scalar_lea.vmem %s6, %s1455
      $region56: #{up_forward.1} parent=51 // pred_fallthru
        _
    $region52: #{up_forward.1} parent=5 // pred_fallthru
      _
  $region6: #{up_forward.1} parent=0 // loop_footer
    %s16 = sadd.s32 1, %s12
  $region7: #{up_forward.1} parent=0 // loop_footer_branch
    %11 = sbr.rel target = $region3
  $region8: #{up_forward.1} parent=0 // loop_exit
    _

</llo_original>
